<compile_context>
chip_gen: v6e
topology: v6e:2x2x1
jax: 0.10.0
libtpu: 0.0.40
codegen_flags: <defaults>
</compile_context>

<pallas_src>
import functools

import jax
import jax.numpy as jnp
from jax.experimental import pallas as pl
from jax.experimental.pallas import tpu as pltpu

LEAKY_SLOPE = 0.01   # torch.nn.LeakyReLU default
BATCH_TILE = 128     # rows per grid step (>= one full MXU M-dimension push)


def _leaky_relu(x):
    return jnp.where(x >= 0, x, LEAKY_SLOPE * x)


def vae_fwd_kernel(
    x_ref, eps_ref,
    w1_ref, b1_ref, w2_ref, b2_ref,
    wmv_ref, bmv_ref,              # fused [Wmu | Wvar], [bmu | bvar]
    w3_ref, b3_ref, w4_ref, b4_ref,
    xrec_ref, mulogvar_ref,
    *, latent_size,
):
    f32 = jnp.float32
    bf16 = jnp.bfloat16

    # ---------------- encoder ----------------
    xb = x_ref[...].astype(bf16)
    h1 = jnp.dot(xb, w1_ref[...], preferred_element_type=f32) + b1_ref[...]
    h1 = _leaky_relu(h1).astype(bf16)

    h2 = jnp.dot(h1, w2_ref[...], preferred_element_type=f32) + b2_ref[...]
    h2 = _leaky_relu(h2).astype(bf16)

    # ---------------- fused mu / logVar head ----------------
    mv = jnp.dot(h2, wmv_ref[...], preferred_element_type=f32) + bmv_ref[...]
    mu = mv[:, :latent_size]
    logvar = mv[:, latent_size:]

    # ---------------- reparameterize ----------------
    # eps is U[0,1) when training (torch.rand_like semantics of the original
    # module), all-zeros when not training (so z == mu exactly).
    std = jnp.exp(0.5 * logvar)
    z = (mu + eps_ref[...] * std).astype(bf16)

    # ---------------- decoder ----------------
    d1 = jnp.dot(z, w3_ref[...], preferred_element_type=f32) + b3_ref[...]
    d1 = _leaky_relu(d1).astype(bf16)

    d2 = jnp.dot(d1, w4_ref[...], preferred_element_type=f32) + b4_ref[...]
    # sigmoid via EUP approx reciprocal (exp already on EUP; divide avoided)
    x_recon = pl.reciprocal(1.0 + jnp.exp(-d2), approx=True)

    xrec_ref[...] = x_recon.astype(xrec_ref.dtype)
    mulogvar_ref[...] = mv.astype(mulogvar_ref.dtype)


def make_vae_params(key, sample_size, latent_size, dtype=jnp.float32):
    """Deterministic synthetic parameters; weights are (in, out)."""
    hid = latent_size ** 2
    shapes = {
        "w1": (sample_size, hid), "b1": (1, hid),
        "w2": (hid, 2 * latent_size), "b2": (1, 2 * latent_size),
        "wmu": (2 * latent_size, latent_size), "bmu": (1, latent_size),
        "wvar": (2 * latent_size, latent_size), "bvar": (1, latent_size),
        "w3": (latent_size, hid), "b3": (1, hid),
        "w4": (hid, sample_size), "b4": (1, sample_size),
    }
    params = {}
    for i, (name, shp) in enumerate(shapes.items()):
        k = jax.random.fold_in(key, i)
        fan_in = shp[0] if name.startswith("w") else shp[1]
        scale = 1.0 / jnp.sqrt(jnp.float32(fan_in))
        params[name] = (jax.random.uniform(k, shp, jnp.float32, -1.0, 1.0) * scale).astype(dtype)
    return params


@functools.partial(jax.jit, static_argnames=("training",))
def vae_forward(x, eps_key, params, training=True):
    batch, sample_size = x.shape
    latent_size = params["wmu"].shape[1]
    two_l = 2 * latent_size

    if training:
        eps = jax.random.uniform(eps_key, (batch, latent_size), jnp.float32)
    else:
        eps = jnp.zeros((batch, latent_size), jnp.float32)

    # Pad batch to a multiple of BATCH_TILE so every grid step feeds the MXU
    # a full 128-row tile (padding rows are sliced off afterwards).
    nb = pl.cdiv(batch, BATCH_TILE)
    bp = nb * BATCH_TILE
    pad = bp - batch
    if pad:
        x_p = jnp.pad(x, ((0, pad), (0, 0)))
        eps_p = jnp.pad(eps, ((0, pad), (0, 0)))
    else:
        x_p, eps_p = x, eps

    bf16 = jnp.bfloat16
    # bf16 weights for the MXU; f32 biases (added post-accumulation).
    w1 = params["w1"].astype(bf16); b1 = params["b1"].astype(jnp.float32)
    w2 = params["w2"].astype(bf16); b2 = params["b2"].astype(jnp.float32)
    wmv = jnp.concatenate([params["wmu"], params["wvar"]], axis=1).astype(bf16)
    bmv = jnp.concatenate([params["bmu"], params["bvar"]], axis=1).astype(jnp.float32)
    w3 = params["w3"].astype(bf16); b3 = params["b3"].astype(jnp.float32)
    w4 = params["w4"].astype(bf16); b4 = params["b4"].astype(jnp.float32)

    def row_spec(cols):                       # tiled over the batch grid axis
        return pl.BlockSpec((BATCH_TILE, cols), lambda i: (i, 0))

    def resident_spec(shape):                 # VMEM-resident across all steps
        return pl.BlockSpec(shape, lambda i: (0, 0))

    in_specs = [
        row_spec(sample_size),                # x
        row_spec(latent_size),                # eps
        resident_spec(w1.shape), resident_spec(b1.shape),
        resident_spec(w2.shape), resident_spec(b2.shape),
        resident_spec(wmv.shape), resident_spec(bmv.shape),
        resident_spec(w3.shape), resident_spec(b3.shape),
        resident_spec(w4.shape), resident_spec(b4.shape),
    ]
    out_specs = (row_spec(sample_size), row_spec(two_l))
    out_shape = (
        jax.ShapeDtypeStruct((bp, sample_size), jnp.float32),  # x_recon
        jax.ShapeDtypeStruct((bp, two_l), jnp.float32),        # packed mu|logVar
    )

    kernel = functools.partial(vae_fwd_kernel, latent_size=latent_size)
    x_recon_p, mulogvar_p = pl.pallas_call(
        kernel,
        grid=(nb,),
        in_specs=in_specs,
        out_specs=out_specs,
        out_shape=out_shape,
        compiler_params=pltpu.CompilerParams(
            dimension_semantics=("parallel",),   # shards batch across 2 TCs on v7x
        ),
    )(x_p, eps_p, w1, b1, w2, b2, wmv, bmv, w3, b3, w4, b4)

    x_recon = x_recon_p[:batch]
    mu = mulogvar_p[:batch, :latent_size]
    logvar = mulogvar_p[:batch, latent_size:]
    return x_recon, mu, logvar


def vae_forward_ref(x, eps, params):
    """Pure-JAX f32 reference (original module math) for a sanity check."""
    h1 = _leaky_relu(x @ params["w1"] + params["b1"])
    h2 = _leaky_relu(h1 @ params["w2"] + params["b2"])
    mu = h2 @ params["wmu"] + params["bmu"]
    logvar = h2 @ params["wvar"] + params["bvar"]
    z = mu + eps * jnp.exp(0.5 * logvar)
    d1 = _leaky_relu(z @ params["w3"] + params["b3"])
    x_recon = jax.nn.sigmoid(d1 @ params["w4"] + params["b4"])
    return x_recon, mu, logvar


if __name__ == "__main__":
    # Shapes consistent with the module's constructor:
    #   sampleSize=128, latentSpaceSize=16 -> hidden = 256, 2L = 32
    sample_size = 128
    latent_size = 16
    batch = 8

    root = jax.random.PRNGKey(0)
    k_params, k_x, k_eps = jax.random.split(root, 3)

    params = make_vae_params(k_params, sample_size, latent_size)
    x = jax.random.uniform(k_x, (batch, sample_size), jnp.float32)

    # eval-mode pass (z == mu, deterministic) checked against the f32 reference;
    # tolerance relaxed because the kernel feeds the MXU bf16 inputs and uses
    # an approx reciprocal for the sigmoid.
    x_recon, mu, logvar = vae_forward(x, k_eps, params, training=False)
    jax.block_until_ready((x_recon, mu, logvar))

    ref = vae_forward_ref(x, jnp.zeros((batch, latent_size), jnp.float32), params)
    assert jnp.allclose(x_recon, ref[0], atol=5e-2), "x_recon mismatch"
    assert jnp.allclose(mu, ref[1], atol=5e-2), "mu mismatch"
    assert jnp.allclose(logvar, ref[2], atol=5e-2), "logVar mismatch"

    # training-mode pass (uses uniform eps, matching torch.rand_like)
    out_train = vae_forward(x, k_eps, params, training=True)
    jax.block_until_ready(out_train)

    print("KERNEL_OK")
</pallas_src>

<mosaic_0001>
module attributes {stable_mosaic.version = 11 : i64} {
  func.func @vae_fwd_kernel(%arg0: i32, %arg1: memref<128x128xf32, #tpu.memory_space<vmem>>, %arg2: memref<128x16xf32, #tpu.memory_space<vmem>>, %arg3: memref<128x256xbf16, #tpu.memory_space<vmem>>, %arg4: memref<1x256xf32, #tpu.memory_space<vmem>>, %arg5: memref<256x32xbf16, #tpu.memory_space<vmem>>, %arg6: memref<1x32xf32, #tpu.memory_space<vmem>>, %arg7: memref<32x32xbf16, #tpu.memory_space<vmem>>, %arg8: memref<1x32xf32, #tpu.memory_space<vmem>>, %arg9: memref<16x256xbf16, #tpu.memory_space<vmem>>, %arg10: memref<1x256xf32, #tpu.memory_space<vmem>>, %arg11: memref<256x128xbf16, #tpu.memory_space<vmem>>, %arg12: memref<1x128xf32, #tpu.memory_space<vmem>>, %arg13: memref<128x128xf32, #tpu.memory_space<vmem>>, %arg14: memref<128x32xf32, #tpu.memory_space<vmem>>) attributes {dimension_semantics = [#tpu.dimension_semantics<parallel>], iteration_bounds = array<i64: 1>, scalar_prefetch = 0 : i64, scratch_operands = 0 : i64, tpu.core_type = #tpu.core_type<tc>, window_params = [{transform_indices = @transform_0, window_bounds = array<i64: 128, 128>}, {transform_indices = @transform_1, window_bounds = array<i64: 128, 16>}, {pipeline_mode = #tpu.pipeline_mode<synchronous>, transform_indices = @transform_2, window_bounds = array<i64: 128, 256>}, {pipeline_mode = #tpu.pipeline_mode<synchronous>, transform_indices = @transform_3, window_bounds = array<i64: 1, 256>}, {pipeline_mode = #tpu.pipeline_mode<synchronous>, transform_indices = @transform_4, window_bounds = array<i64: 256, 32>}, {pipeline_mode = #tpu.pipeline_mode<synchronous>, transform_indices = @transform_5, window_bounds = array<i64: 1, 32>}, {pipeline_mode = #tpu.pipeline_mode<synchronous>, transform_indices = @transform_6, window_bounds = array<i64: 32, 32>}, {pipeline_mode = #tpu.pipeline_mode<synchronous>, transform_indices = @transform_7, window_bounds = array<i64: 1, 32>}, {pipeline_mode = #tpu.pipeline_mode<synchronous>, transform_indices = @transform_8, window_bounds = array<i64: 16, 256>}, {pipeline_mode = #tpu.pipeline_mode<synchronous>, transform_indices = @transform_9, window_bounds = array<i64: 1, 256>}, {pipeline_mode = #tpu.pipeline_mode<synchronous>, transform_indices = @transform_10, window_bounds = array<i64: 256, 128>}, {pipeline_mode = #tpu.pipeline_mode<synchronous>, transform_indices = @transform_11, window_bounds = array<i64: 1, 128>}, {transform_indices = @transform_12, window_bounds = array<i64: 128, 128>}, {transform_indices = @transform_13, window_bounds = array<i64: 128, 32>}]} {
    %c0 = arith.constant 0 : index
    %c0_0 = arith.constant 0 : index
    %0 = vector.load %arg1[%c0, %c0_0] : memref<128x128xf32, #tpu.memory_space<vmem>>, vector<128x128xf32>
    %1 = arith.truncf %0 : vector<128x128xf32> to vector<128x128xbf16>
    %c0_1 = arith.constant 0 : index
    %c0_2 = arith.constant 0 : index
    %2 = vector.load %arg3[%c0_1, %c0_2] : memref<128x256xbf16, #tpu.memory_space<vmem>>, vector<128x256xbf16>
    %cst = arith.constant dense<0.000000e+00> : vector<128x256xf32>
    %3 = tpu.matmul %1, %2, %cst {dimension_numbers = #tpu.dot_dimension_numbers<[1], [0], [0], [1], [0, 0, 1, 1], [], []>} : vector<128x128xbf16>, vector<128x256xbf16>, vector<128x256xf32> -> vector<128x256xf32>
    %c0_3 = arith.constant 0 : index
    %c0_4 = arith.constant 0 : index
    %4 = vector.load %arg4[%c0_3, %c0_4] : memref<1x256xf32, #tpu.memory_space<vmem>>, vector<1x256xf32>
    %5 = vector.broadcast %4 : vector<1x256xf32> to vector<128x256xf32>
    %6 = arith.addf %3, %5 : vector<128x256xf32>
    %cst_5 = arith.constant 0.000000e+00 : f32
    %7 = vector.broadcast %cst_5 : f32 to vector<128x256xf32>
    %8 = arith.cmpf oge, %6, %7 : vector<128x256xf32>
    %cst_6 = arith.constant 0.00999999977 : f32
    %9 = vector.broadcast %cst_6 : f32 to vector<128x256xf32>
    %10 = arith.mulf %9, %6 : vector<128x256xf32>
    %11 = arith.select %8, %6, %10 : vector<128x256xi1>, vector<128x256xf32>
    %12 = arith.truncf %11 : vector<128x256xf32> to vector<128x256xbf16>
    %c0_7 = arith.constant 0 : index
    %c0_8 = arith.constant 0 : index
    %13 = vector.load %arg5[%c0_7, %c0_8] : memref<256x32xbf16, #tpu.memory_space<vmem>>, vector<256x32xbf16>
    %cst_9 = arith.constant dense<0.000000e+00> : vector<128x32xf32>
    %14 = tpu.matmul %12, %13, %cst_9 {dimension_numbers = #tpu.dot_dimension_numbers<[1], [0], [0], [1], [0, 0, 1, 1], [], []>} : vector<128x256xbf16>, vector<256x32xbf16>, vector<128x32xf32> -> vector<128x32xf32>
    %c0_10 = arith.constant 0 : index
    %c0_11 = arith.constant 0 : index
    %15 = vector.load %arg6[%c0_10, %c0_11] : memref<1x32xf32, #tpu.memory_space<vmem>>, vector<1x32xf32>
    %16 = vector.broadcast %15 : vector<1x32xf32> to vector<128x32xf32>
    %17 = arith.addf %14, %16 : vector<128x32xf32>
    %cst_12 = arith.constant 0.000000e+00 : f32
    %18 = vector.broadcast %cst_12 : f32 to vector<128x32xf32>
    %19 = arith.cmpf oge, %17, %18 : vector<128x32xf32>
    %cst_13 = arith.constant 0.00999999977 : f32
    %20 = vector.broadcast %cst_13 : f32 to vector<128x32xf32>
    %21 = arith.mulf %20, %17 : vector<128x32xf32>
    %22 = arith.select %19, %17, %21 : vector<128x32xi1>, vector<128x32xf32>
    %23 = arith.truncf %22 : vector<128x32xf32> to vector<128x32xbf16>
    %c0_14 = arith.constant 0 : index
    %c0_15 = arith.constant 0 : index
    %24 = vector.load %arg7[%c0_14, %c0_15] : memref<32x32xbf16, #tpu.memory_space<vmem>>, vector<32x32xbf16>
    %cst_16 = arith.constant dense<0.000000e+00> : vector<128x32xf32>
    %25 = tpu.matmul %23, %24, %cst_16 {dimension_numbers = #tpu.dot_dimension_numbers<[1], [0], [0], [1], [0, 0, 1, 1], [], []>} : vector<128x32xbf16>, vector<32x32xbf16>, vector<128x32xf32> -> vector<128x32xf32>
    %c0_17 = arith.constant 0 : index
    %c0_18 = arith.constant 0 : index
    %26 = vector.load %arg8[%c0_17, %c0_18] : memref<1x32xf32, #tpu.memory_space<vmem>>, vector<1x32xf32>
    %27 = vector.broadcast %26 : vector<1x32xf32> to vector<128x32xf32>
    %28 = arith.addf %25, %27 : vector<128x32xf32>
    %29 = vector.extract_strided_slice %28 {offsets = [0, 0], sizes = [128, 16], strides = [1, 1]} : vector<128x32xf32> to vector<128x16xf32>
    %30 = vector.extract_strided_slice %28 {offsets = [0, 16], sizes = [128, 16], strides = [1, 1]} : vector<128x32xf32> to vector<128x16xf32>
    %cst_19 = arith.constant 5.000000e-01 : f32
    %31 = vector.broadcast %cst_19 : f32 to vector<128x16xf32>
    %32 = arith.mulf %31, %30 : vector<128x16xf32>
    %33 = math.exp %32 : vector<128x16xf32>
    %c0_20 = arith.constant 0 : index
    %c0_21 = arith.constant 0 : index
    %34 = vector.load %arg2[%c0_20, %c0_21] : memref<128x16xf32, #tpu.memory_space<vmem>>, vector<128x16xf32>
    %35 = arith.mulf %34, %33 : vector<128x16xf32>
    %36 = arith.addf %29, %35 : vector<128x16xf32>
    %37 = arith.truncf %36 : vector<128x16xf32> to vector<128x16xbf16>
    %c0_22 = arith.constant 0 : index
    %c0_23 = arith.constant 0 : index
    %38 = vector.load %arg9[%c0_22, %c0_23] : memref<16x256xbf16, #tpu.memory_space<vmem>>, vector<16x256xbf16>
    %cst_24 = arith.constant dense<0.000000e+00> : vector<128x256xf32>
    %39 = tpu.matmul %37, %38, %cst_24 {dimension_numbers = #tpu.dot_dimension_numbers<[1], [0], [0], [1], [0, 0, 1, 1], [], []>} : vector<128x16xbf16>, vector<16x256xbf16>, vector<128x256xf32> -> vector<128x256xf32>
    %c0_25 = arith.constant 0 : index
    %c0_26 = arith.constant 0 : index
    %40 = vector.load %arg10[%c0_25, %c0_26] : memref<1x256xf32, #tpu.memory_space<vmem>>, vector<1x256xf32>
    %41 = vector.broadcast %40 : vector<1x256xf32> to vector<128x256xf32>
    %42 = arith.addf %39, %41 : vector<128x256xf32>
    %cst_27 = arith.constant 0.000000e+00 : f32
    %43 = vector.broadcast %cst_27 : f32 to vector<128x256xf32>
    %44 = arith.cmpf oge, %42, %43 : vector<128x256xf32>
    %cst_28 = arith.constant 0.00999999977 : f32
    %45 = vector.broadcast %cst_28 : f32 to vector<128x256xf32>
    %46 = arith.mulf %45, %42 : vector<128x256xf32>
    %47 = arith.select %44, %42, %46 : vector<128x256xi1>, vector<128x256xf32>
    %48 = arith.truncf %47 : vector<128x256xf32> to vector<128x256xbf16>
    %c0_29 = arith.constant 0 : index
    %c0_30 = arith.constant 0 : index
    %49 = vector.load %arg11[%c0_29, %c0_30] : memref<256x128xbf16, #tpu.memory_space<vmem>>, vector<256x128xbf16>
    %cst_31 = arith.constant dense<0.000000e+00> : vector<128x128xf32>
    %50 = tpu.matmul %48, %49, %cst_31 {dimension_numbers = #tpu.dot_dimension_numbers<[1], [0], [0], [1], [0, 0, 1, 1], [], []>} : vector<128x256xbf16>, vector<256x128xbf16>, vector<128x128xf32> -> vector<128x128xf32>
    %c0_32 = arith.constant 0 : index
    %c0_33 = arith.constant 0 : index
    %51 = vector.load %arg12[%c0_32, %c0_33] : memref<1x128xf32, #tpu.memory_space<vmem>>, vector<1x128xf32>
    %52 = vector.broadcast %51 : vector<1x128xf32> to vector<128x128xf32>
    %53 = arith.addf %50, %52 : vector<128x128xf32>
    %cst_34 = arith.constant 0.000000e+00 : f32
    %54 = vector.broadcast %cst_34 : f32 to vector<128x128xf32>
    %55 = arith.subf %54, %53 : vector<128x128xf32>
    %56 = math.exp %55 : vector<128x128xf32>
    %cst_35 = arith.constant 1.000000e+00 : f32
    %57 = vector.broadcast %cst_35 : f32 to vector<128x128xf32>
    %58 = arith.addf %57, %56 : vector<128x128xf32>
    %59 = tpu.reciprocal %58 {approx = true} : vector<128x128xf32> -> vector<128x128xf32>
    %c0_36 = arith.constant 0 : index
    %c0_37 = arith.constant 0 : index
    %60 = vector.load %arg13[%c0_36, %c0_37] : memref<128x128xf32, #tpu.memory_space<vmem>>, vector<128x128xf32>
    tpu.vector_store %arg13[%c0_36, %c0_37], %59 {strides = array<i32>} : memref<128x128xf32, #tpu.memory_space<vmem>>, vector<128x128xf32>,
    %c0_38 = arith.constant 0 : index
    %c0_39 = arith.constant 0 : index
    %61 = vector.load %arg14[%c0_38, %c0_39] : memref<128x32xf32, #tpu.memory_space<vmem>>, vector<128x32xf32>
    tpu.vector_store %arg14[%c0_38, %c0_39], %28 {strides = array<i32>} : memref<128x32xf32, #tpu.memory_space<vmem>>, vector<128x32xf32>,
    return
  }
  func.func @transform_0(%arg0: i32) -> (i32, i32) {
    %c0_i32 = arith.constant 0 : i32
    %c0_i32_0 = arith.constant 0 : i32
    return %arg0, %c0_i32 : i32, i32
  }
  func.func @transform_1(%arg0: i32) -> (i32, i32) {
    %c0_i32 = arith.constant 0 : i32
    %c0_i32_0 = arith.constant 0 : i32
    return %arg0, %c0_i32 : i32, i32
  }
  func.func @transform_2(%arg0: i32) -> (i32, i32) {
    %c0_i32 = arith.constant 0 : i32
    %c0_i32_0 = arith.constant 0 : i32
    %c0_i32_1 = arith.constant 0 : i32
    return %c0_i32, %c0_i32_0 : i32, i32
  }
  func.func @transform_3(%arg0: i32) -> (i32, i32) {
    %c0_i32 = arith.constant 0 : i32
    %c0_i32_0 = arith.constant 0 : i32
    %c0_i32_1 = arith.constant 0 : i32
    return %c0_i32, %c0_i32_0 : i32, i32
  }
  func.func @transform_4(%arg0: i32) -> (i32, i32) {
    %c0_i32 = arith.constant 0 : i32
    %c0_i32_0 = arith.constant 0 : i32
    %c0_i32_1 = arith.constant 0 : i32
    return %c0_i32, %c0_i32_0 : i32, i32
  }
  func.func @transform_5(%arg0: i32) -> (i32, i32) {
    %c0_i32 = arith.constant 0 : i32
    %c0_i32_0 = arith.constant 0 : i32
    %c0_i32_1 = arith.constant 0 : i32
    return %c0_i32, %c0_i32_0 : i32, i32
  }
  func.func @transform_6(%arg0: i32) -> (i32, i32) {
    %c0_i32 = arith.constant 0 : i32
    %c0_i32_0 = arith.constant 0 : i32
    %c0_i32_1 = arith.constant 0 : i32
    return %c0_i32, %c0_i32_0 : i32, i32
  }
  func.func @transform_7(%arg0: i32) -> (i32, i32) {
    %c0_i32 = arith.constant 0 : i32
    %c0_i32_0 = arith.constant 0 : i32
    %c0_i32_1 = arith.constant 0 : i32
    return %c0_i32, %c0_i32_0 : i32, i32
  }
  func.func @transform_8(%arg0: i32) -> (i32, i32) {
    %c0_i32 = arith.constant 0 : i32
    %c0_i32_0 = arith.constant 0 : i32
    %c0_i32_1 = arith.constant 0 : i32
    return %c0_i32, %c0_i32_0 : i32, i32
  }
  func.func @transform_9(%arg0: i32) -> (i32, i32) {
    %c0_i32 = arith.constant 0 : i32
    %c0_i32_0 = arith.constant 0 : i32
    %c0_i32_1 = arith.constant 0 : i32
    return %c0_i32, %c0_i32_0 : i32, i32
  }
  func.func @transform_10(%arg0: i32) -> (i32, i32) {
    %c0_i32 = arith.constant 0 : i32
    %c0_i32_0 = arith.constant 0 : i32
    %c0_i32_1 = arith.constant 0 : i32
    return %c0_i32, %c0_i32_0 : i32, i32
  }
  func.func @transform_11(%arg0: i32) -> (i32, i32) {
    %c0_i32 = arith.constant 0 : i32
    %c0_i32_0 = arith.constant 0 : i32
    %c0_i32_1 = arith.constant 0 : i32
    return %c0_i32, %c0_i32_0 : i32, i32
  }
  func.func @transform_12(%arg0: i32) -> (i32, i32) {
    %c0_i32 = arith.constant 0 : i32
    %c0_i32_0 = arith.constant 0 : i32
    return %arg0, %c0_i32 : i32, i32
  }
  func.func @transform_13(%arg0: i32) -> (i32, i32) {
    %c0_i32 = arith.constant 0 : i32
    %c0_i32_0 = arith.constant 0 : i32
    return %arg0, %c0_i32 : i32, i32
  }
}

</mosaic_0001>

<llo_original>
// kernel: vae_forward.1
$region0: #{vae_forward.1}
  #allocation0 [shape = 'u32[]', space=smem, size = 0x4, offset = 0x4, fixed_abs, tag = 'smem constant byte address 0x4 - core index']
  #allocation1 [shape = 'u32[144,128]{1,0:T(1,128)}', space=vmem, size = 0x12000, scoped, tag = 'internal scratch']
  %s0 = inlined_call_operand.vmem [shape: f32[128,128], index: 0, kind: input, shape index: {}]
  %s1 = inlined_call_operand.vmem [shape: f32[128,16], index: 1, kind: input, shape index: {}]
  %s2 = inlined_call_operand.vmem [shape: bf16[128,256], index: 2, kind: input, shape index: {}]
  %s3 = inlined_call_operand.vmem [shape: f32[1,256], index: 3, kind: input, shape index: {}]
  %s4 = inlined_call_operand.vmem [shape: bf16[256,32], index: 4, kind: input, shape index: {}]
  %s5 = inlined_call_operand.vmem [shape: f32[1,32], index: 5, kind: input, shape index: {}]
  %s6 = inlined_call_operand.vmem [shape: bf16[32,32], index: 6, kind: input, shape index: {}]
  %s7 = inlined_call_operand.vmem [shape: f32[1,32], index: 7, kind: input, shape index: {}]
  %s8 = inlined_call_operand.vmem [shape: bf16[16,256], index: 8, kind: input, shape index: {}]
  %s9 = inlined_call_operand.vmem [shape: f32[1,256], index: 9, kind: input, shape index: {}]
  %s10 = inlined_call_operand.vmem [shape: bf16[256,128], index: 10, kind: input, shape index: {}]
  %s11 = inlined_call_operand.vmem [shape: f32[1,128], index: 11, kind: input, shape index: {}]
  %s12 = inlined_call_operand.vmem [shape: f32[128,128], index: 12, kind: output, shape index: {0}]
  %s13 = inlined_call_operand.vmem [shape: f32[128,32], index: 13, kind: output, shape index: {1}]
  %14 = xla_tuple %s12, %s13
  %s15 = sld [smem:[#allocation0]]
  $region66: #{vae_forward.1} parent=0
    _
  %s17 = ssub.s32 1, %s15
  %s18 = scalar_select 0, %s17, %s15
  // Predicated region
  $region2: #{vae_forward.1} parent=0 // pred_check
    _
  $region3: #{vae_forward.1} parent=0 // pred_check_branch
    %20 = sbr.rel (0) target = $region5
  $region4: #{vae_forward.1} parent=0 // pred_region
    _
  $region5: #{vae_forward.1} parent=0 // pred_fallthru
    _
  // Predicated region
  $region6: #{vae_forward.1} parent=0 // pred_check
    _
  $region7: #{vae_forward.1} parent=0 // pred_check_branch
    %22 = sbr.rel (0) target = $region9
  $region8: #{vae_forward.1} parent=0 // pred_region
    _
  $region9: #{vae_forward.1} parent=0 // pred_fallthru
    _
  // Predicated region
  $region10: #{vae_forward.1} parent=0 // pred_check
    _
  $region11: #{vae_forward.1} parent=0 // pred_check_branch
    %24 = sbr.rel (0) target = $region13
  $region12: #{vae_forward.1} parent=0 // pred_region
    _
  $region13: #{vae_forward.1} parent=0 // pred_fallthru
    _
  // Predicated region
  $region14: #{vae_forward.1} parent=0 // pred_check
    _
  $region15: #{vae_forward.1} parent=0 // pred_check_branch
    %26 = sbr.rel (0) target = $region17
  $region16: #{vae_forward.1} parent=0 // pred_region
    _
  $region17: #{vae_forward.1} parent=0 // pred_fallthru
    _
  // Predicated region
  $region18: #{vae_forward.1} parent=0 // pred_check
    _
  $region19: #{vae_forward.1} parent=0 // pred_check_branch
    %28 = sbr.rel (0) target = $region21
  $region20: #{vae_forward.1} parent=0 // pred_region
    _
  $region21: #{vae_forward.1} parent=0 // pred_fallthru
    _
  // Predicated region
  $region22: #{vae_forward.1} parent=0 // pred_check
    _
  $region23: #{vae_forward.1} parent=0 // pred_check_branch
    %30 = sbr.rel (0) target = $region25
  $region24: #{vae_forward.1} parent=0 // pred_region
    _
  $region25: #{vae_forward.1} parent=0 // pred_fallthru
    _
  // Predicated region
  $region26: #{vae_forward.1} parent=0 // pred_check
    _
  $region27: #{vae_forward.1} parent=0 // pred_check_branch
    %32 = sbr.rel (0) target = $region29
  $region28: #{vae_forward.1} parent=0 // pred_region
    _
  $region29: #{vae_forward.1} parent=0 // pred_fallthru
    _
  // Predicated region
  $region30: #{vae_forward.1} parent=0 // pred_check
    _
  $region31: #{vae_forward.1} parent=0 // pred_check_branch
    %34 = sbr.rel (0) target = $region33
  $region32: #{vae_forward.1} parent=0 // pred_region
    _
  $region33: #{vae_forward.1} parent=0 // pred_fallthru
    _
  // Predicated region
  $region34: #{vae_forward.1} parent=0 // pred_check
    _
  $region35: #{vae_forward.1} parent=0 // pred_check_branch
    %36 = sbr.rel (0) target = $region37
  $region36: #{vae_forward.1} parent=0 // pred_region
    _
  $region37: #{vae_forward.1} parent=0 // pred_fallthru
    _
  // Predicated region
  $region38: #{vae_forward.1} parent=0 // pred_check
    _
  $region39: #{vae_forward.1} parent=0 // pred_check_branch
    %38 = sbr.rel (0) target = $region41
  $region40: #{vae_forward.1} parent=0 // pred_region
    _
  $region41: #{vae_forward.1} parent=0 // pred_fallthru
    _
  // Predicated region
  $region42: #{vae_forward.1} parent=0 // pred_check
    _
  $region43: #{vae_forward.1} parent=0 // pred_check_branch
    %40 = sbr.rel (0) target = $region45
  $region44: #{vae_forward.1} parent=0 // pred_region
    _
  $region45: #{vae_forward.1} parent=0 // pred_fallthru
    _
  // Predicated region
  $region46: #{vae_forward.1} parent=0 // pred_check
    _
  $region47: #{vae_forward.1} parent=0 // pred_check_branch
    %42 = sbr.rel (0) target = $region49
  $region48: #{vae_forward.1} parent=0 // pred_region
    _
  $region49: #{vae_forward.1} parent=0 // pred_fallthru
    _
  %v44 = vld [vmem:[%s0] sm:$0xff]
  %v45 = vld [vmem:[%s0 + $0x8] sm:$0xff]
  %v46 = vld [vmem:[%s0 + $0x10] sm:$0xff]
  %v47 = vld [vmem:[%s0 + $0x18] sm:$0xff]
  %v48 = vld [vmem:[%s0 + $0x20] sm:$0xff]
  %v49 = vld [vmem:[%s0 + $0x28] sm:$0xff]
  %v50 = vld [vmem:[%s0 + $0x30] sm:$0xff]
  %v51 = vld [vmem:[%s0 + $0x38] sm:$0xff]
  %v52 = vld [vmem:[%s0 + $0x40] sm:$0xff]
  %v53 = vld [vmem:[%s0 + $0x48] sm:$0xff]
  %v54 = vld [vmem:[%s0 + $0x50] sm:$0xff]
  %v55 = vld [vmem:[%s0 + $0x58] sm:$0xff]
  %v56 = vld [vmem:[%s0 + $0x60] sm:$0xff]
  %v57 = vld [vmem:[%s0 + $0x68] sm:$0xff]
  %v58 = vld [vmem:[%s0 + $0x70] sm:$0xff]
  %v59 = vld [vmem:[%s0 + $0x78] sm:$0xff]
  %v60 = vpack.c.bf16 %v45, %v44
  %v61 = vpack.c.bf16 %v47, %v46
  %v62 = vpack.c.bf16 %v49, %v48
  %v63 = vpack.c.bf16 %v51, %v50
  %v64 = vpack.c.bf16 %v53, %v52
  %v65 = vpack.c.bf16 %v55, %v54
  %v66 = vpack.c.bf16 %v57, %v56
  %v67 = vpack.c.bf16 %v59, %v58
  %v68 = vld [vmem:[%s2] sm:$0xff]
  %v69 = vld [vmem:[%s2 + $0x8] sm:$0xff]
  %v70 = vld [vmem:[%s2 + $0x10] sm:$0xff]
  %v71 = vld [vmem:[%s2 + $0x18] sm:$0xff]
  %v72 = vld [vmem:[%s2 + $0x20] sm:$0xff]
  %v73 = vld [vmem:[%s2 + $0x28] sm:$0xff]
  %v74 = vld [vmem:[%s2 + $0x30] sm:$0xff]
  %v75 = vld [vmem:[%s2 + $0x38] sm:$0xff]
  %v76 = vld [vmem:[%s2 + $0x40] sm:$0xff]
  %v77 = vld [vmem:[%s2 + $0x48] sm:$0xff]
  %v78 = vld [vmem:[%s2 + $0x50] sm:$0xff]
  %v79 = vld [vmem:[%s2 + $0x58] sm:$0xff]
  %v80 = vld [vmem:[%s2 + $0x60] sm:$0xff]
  %v81 = vld [vmem:[%s2 + $0x68] sm:$0xff]
  %v82 = vld [vmem:[%s2 + $0x70] sm:$0xff]
  %v83 = vld [vmem:[%s2 + $0x78] sm:$0xff]
  %v84 = vld [vmem:[%s3] sm:$0x3]
  %v86 = vlaneseq
  %v87 = vshrl.u32 %v86, 7
  %v88 = vsub.s32 0, %v87
  %v89 = vrot.slane %v84, %v88
  %v90 = vlaneseq
  %v91 = vshrl.u32 %v90, 7
  %v92 = vsub.s32 1, %v91
  %v93 = vrot.slane %v84, %v92
  %v112 = vunpack.c.l.b16 %v68
  %v113 = vunpack.c.h.b16 %v68
  %v114 = vunpack.c.l.b16 %v69
  %v115 = vunpack.c.h.b16 %v69
  %v116 = vunpack.c.l.b16 %v70
  %v117 = vunpack.c.h.b16 %v70
  %v118 = vunpack.c.l.b16 %v71
  %v119 = vunpack.c.h.b16 %v71
  %v120 = vunpack.c.l.b16 %v72
  %v121 = vunpack.c.h.b16 %v72
  %v122 = vunpack.c.l.b16 %v73
  %v123 = vunpack.c.h.b16 %v73
  %v124 = vunpack.c.l.b16 %v74
  %v125 = vunpack.c.h.b16 %v74
  %v126 = vunpack.c.l.b16 %v75
  %v127 = vunpack.c.h.b16 %v75
  %v128 = vunpack.c.l.b16 %v76
  %v129 = vunpack.c.h.b16 %v76
  %v130 = vunpack.c.l.b16 %v77
  %v131 = vunpack.c.h.b16 %v77
  %v132 = vunpack.c.l.b16 %v78
  %v133 = vunpack.c.h.b16 %v78
  %v134 = vunpack.c.l.b16 %v79
  %v135 = vunpack.c.h.b16 %v79
  %v136 = vunpack.c.l.b16 %v80
  %v137 = vunpack.c.h.b16 %v80
  %v138 = vunpack.c.l.b16 %v81
  %v139 = vunpack.c.h.b16 %v81
  %v140 = vunpack.c.l.b16 %v82
  %v141 = vunpack.c.h.b16 %v82
  %v142 = vunpack.c.l.b16 %v83
  %v143 = vunpack.c.h.b16 %v83
  %v144 = vpack.c.b16 %v114, %v112
  %v145 = vpack.c.b16 %v115, %v113
  %v146 = vpack.c.b16 %v118, %v116
  %v147 = vpack.c.b16 %v119, %v117
  %v148 = vpack.c.b16 %v122, %v120
  %v149 = vpack.c.b16 %v123, %v121
  %v150 = vpack.c.b16 %v126, %v124
  %v151 = vpack.c.b16 %v127, %v125
  %v152 = vpack.c.b16 %v130, %v128
  %v153 = vpack.c.b16 %v131, %v129
  %v154 = vpack.c.b16 %v134, %v132
  %v155 = vpack.c.b16 %v135, %v133
  %v156 = vpack.c.b16 %v138, %v136
  %v157 = vpack.c.b16 %v139, %v137
  %v158 = vpack.c.b16 %v142, %v140
  %v159 = vpack.c.b16 %v143, %v141
  %176 = vmatprep.subr.bf16.mxu0 %v159
  %177 = vmatpush1.bf16.msra.mxu0 %v158
  %178 = vmatprep.subr.bf16.mxu0 %v157
  %179 = vmatpush1.bf16.msra.mxu0 %v156
  %180 = vmatprep.subr.bf16.mxu0 %v155
  %181 = vmatpush1.bf16.msra.mxu0 %v154
  %182 = vmatprep.subr.bf16.mxu0 %v153
  %183 = vmatpush1.bf16.msra.mxu0 %v152
  %184 = vmatprep.subr.bf16.mxu0 %v151
  %185 = vmatpush1.bf16.msra.mxu0 %v150
  %186 = vmatprep.subr.bf16.mxu0 %v149
  %187 = vmatpush1.bf16.msra.mxu0 %v148
  %188 = vmatprep.subr.bf16.mxu0 %v147
  %189 = vmatpush1.bf16.msra.mxu0 %v146
  %190 = vmatprep.subr.bf16.mxu0 %v145
  %191 = vmatpush1.bf16.msra.mxu0 %v144
  %192 = vmatprep.subr.bf16.mxu0 0
  %193 = vmatpush2.bf16.msra.mxu0 0
  %194 = vmatprep.subr.bf16.mxu0 0
  %195 = vmatpush2.bf16.msra.mxu0 0
  %196 = vmatprep.subr.bf16.mxu0 0
  %197 = vmatpush2.bf16.msra.mxu0 0
  %198 = vmatprep.subr.bf16.mxu0 0
  %199 = vmatpush2.bf16.msra.mxu0 0
  %200 = vmatprep.subr.bf16.mxu0 0
  %201 = vmatpush2.bf16.msra.mxu0 0
  %202 = vmatprep.subr.bf16.mxu0 0
  %203 = vmatpush2.bf16.msra.mxu0 0
  %204 = vmatprep.subr.bf16.mxu0 0
  %205 = vmatpush2.bf16.msra.mxu0 0
  %206 = vmatprep.subr.bf16.mxu0 0
  %207 = vmatpush2.bf16.msra.mxu0 0
  %208 = vmatprep.mubr.bf16.mxu0 0
  %209 = vmatmul.mubr.bf16.gmra.mxu0 %v60
  %v210 = vpop.f32.mrf.mxu0
  %v211 = vadd.f32 %v89, %v210
  %v212 = vpop.f32.mrf.mxu0
  %v213 = vadd.f32 %v93, %v212
  %v214 = vpop.f32.mrf.mxu0
  %v215 = vadd.f32 %v89, %v214
  %v216 = vpop.f32.mrf.mxu0
  %v217 = vadd.f32 %v93, %v216
  %218 = vmatprep.mubr.bf16.mxu0 0
  %219 = vmatmul.mubr.bf16.gmra.mxu0 %v61
  %v220 = vpop.f32.mrf.mxu0
  %v221 = vadd.f32 %v89, %v220
  %v222 = vpop.f32.mrf.mxu0
  %v223 = vadd.f32 %v93, %v222
  %v224 = vpop.f32.mrf.mxu0
  %v225 = vadd.f32 %v89, %v224
  %v226 = vpop.f32.mrf.mxu0
  %v227 = vadd.f32 %v93, %v226
  %228 = vmatprep.mubr.bf16.mxu0 0
  %229 = vmatmul.mubr.bf16.gmra.mxu0 %v62
  %v230 = vpop.f32.mrf.mxu0
  %v231 = vadd.f32 %v89, %v230
  %v232 = vpop.f32.mrf.mxu0
  %v233 = vadd.f32 %v93, %v232
  %v234 = vpop.f32.mrf.mxu0
  %v235 = vadd.f32 %v89, %v234
  %v236 = vpop.f32.mrf.mxu0
  %v237 = vadd.f32 %v93, %v236
  %238 = vmatprep.mubr.bf16.mxu0 0
  %239 = vmatmul.mubr.bf16.gmra.mxu0 %v63
  %v240 = vpop.f32.mrf.mxu0
  %v241 = vadd.f32 %v89, %v240
  %v242 = vpop.f32.mrf.mxu0
  %v243 = vadd.f32 %v93, %v242
  %v244 = vpop.f32.mrf.mxu0
  %v245 = vadd.f32 %v89, %v244
  %v246 = vpop.f32.mrf.mxu0
  %v247 = vadd.f32 %v93, %v246
  %248 = vmatprep.mubr.bf16.mxu0 0
  %249 = vmatmul.mubr.bf16.gmra.mxu0 %v64
  %v250 = vpop.f32.mrf.mxu0
  %v251 = vadd.f32 %v89, %v250
  %v252 = vpop.f32.mrf.mxu0
  %v253 = vadd.f32 %v93, %v252
  %v254 = vpop.f32.mrf.mxu0
  %v255 = vadd.f32 %v89, %v254
  %v256 = vpop.f32.mrf.mxu0
  %v257 = vadd.f32 %v93, %v256
  %258 = vmatprep.mubr.bf16.mxu0 0
  %259 = vmatmul.mubr.bf16.gmra.mxu0 %v65
  %v260 = vpop.f32.mrf.mxu0
  %v261 = vadd.f32 %v89, %v260
  %v262 = vpop.f32.mrf.mxu0
  %v263 = vadd.f32 %v93, %v262
  %v264 = vpop.f32.mrf.mxu0
  %v265 = vadd.f32 %v89, %v264
  %v266 = vpop.f32.mrf.mxu0
  %v267 = vadd.f32 %v93, %v266
  %268 = vmatprep.mubr.bf16.mxu0 0
  %269 = vmatmul.mubr.bf16.gmra.mxu0 %v66
  %v270 = vpop.f32.mrf.mxu0
  %v271 = vadd.f32 %v89, %v270
  %v272 = vpop.f32.mrf.mxu0
  %v273 = vadd.f32 %v93, %v272
  %v274 = vpop.f32.mrf.mxu0
  %v275 = vadd.f32 %v89, %v274
  %v276 = vpop.f32.mrf.mxu0
  %v277 = vadd.f32 %v93, %v276
  %278 = vmatprep.mubr.bf16.mxu0 0
  %279 = vmatmul.mubr.bf16.gmra.mxu0 %v67
  %v280 = vpop.f32.mrf.mxu0
  %v281 = vadd.f32 %v89, %v280
  %v282 = vpop.f32.mrf.mxu0
  %v283 = vadd.f32 %v93, %v282
  %v284 = vpop.f32.mrf.mxu0
  %v285 = vadd.f32 %v89, %v284
  %v286 = vpop.f32.mrf.mxu0
  %v287 = vadd.f32 %v93, %v286
  %288 = vdwg.mxu0
  %vm289 = vcmp.ge.f32.partialorder %v211, 0.0
  %vm290 = vcmp.ge.f32.partialorder %v213, 0.0
  %vm291 = vcmp.ge.f32.partialorder %v215, 0.0
  %vm292 = vcmp.ge.f32.partialorder %v217, 0.0
  %vm293 = vcmp.ge.f32.partialorder %v221, 0.0
  %vm294 = vcmp.ge.f32.partialorder %v223, 0.0
  %vm295 = vcmp.ge.f32.partialorder %v225, 0.0
  %vm296 = vcmp.ge.f32.partialorder %v227, 0.0
  %vm297 = vcmp.ge.f32.partialorder %v231, 0.0
  %vm298 = vcmp.ge.f32.partialorder %v233, 0.0
  %vm299 = vcmp.ge.f32.partialorder %v235, 0.0
  %vm300 = vcmp.ge.f32.partialorder %v237, 0.0
  %vm301 = vcmp.ge.f32.partialorder %v241, 0.0
  %vm302 = vcmp.ge.f32.partialorder %v243, 0.0
  %vm303 = vcmp.ge.f32.partialorder %v245, 0.0
  %vm304 = vcmp.ge.f32.partialorder %v247, 0.0
  %vm305 = vcmp.ge.f32.partialorder %v251, 0.0
  %vm306 = vcmp.ge.f32.partialorder %v253, 0.0
  %vm307 = vcmp.ge.f32.partialorder %v255, 0.0
  %vm308 = vcmp.ge.f32.partialorder %v257, 0.0
  %vm309 = vcmp.ge.f32.partialorder %v261, 0.0
  %vm310 = vcmp.ge.f32.partialorder %v263, 0.0
  %vm311 = vcmp.ge.f32.partialorder %v265, 0.0
  %vm312 = vcmp.ge.f32.partialorder %v267, 0.0
  %vm313 = vcmp.ge.f32.partialorder %v271, 0.0
  %vm314 = vcmp.ge.f32.partialorder %v273, 0.0
  %vm315 = vcmp.ge.f32.partialorder %v275, 0.0
  %vm316 = vcmp.ge.f32.partialorder %v277, 0.0
  %vm317 = vcmp.ge.f32.partialorder %v281, 0.0
  %vm318 = vcmp.ge.f32.partialorder %v283, 0.0
  %vm319 = vcmp.ge.f32.partialorder %v285, 0.0
  %vm320 = vcmp.ge.f32.partialorder %v287, 0.0
  %v321 = vmul.f32 %v211, 0.01
  %v322 = vmul.f32 %v213, 0.01
  %v323 = vmul.f32 %v215, 0.01
  %v324 = vmul.f32 %v217, 0.01
  %v325 = vmul.f32 %v221, 0.01
  %v326 = vmul.f32 %v223, 0.01
  %v327 = vmul.f32 %v225, 0.01
  %v328 = vmul.f32 %v227, 0.01
  %v329 = vmul.f32 %v231, 0.01
  %v330 = vmul.f32 %v233, 0.01
  %v331 = vmul.f32 %v235, 0.01
  %v332 = vmul.f32 %v237, 0.01
  %v333 = vmul.f32 %v241, 0.01
  %v334 = vmul.f32 %v243, 0.01
  %v335 = vmul.f32 %v245, 0.01
  %v336 = vmul.f32 %v247, 0.01
  %v337 = vmul.f32 %v251, 0.01
  %v338 = vmul.f32 %v253, 0.01
  %v339 = vmul.f32 %v255, 0.01
  %v340 = vmul.f32 %v257, 0.01
  %v341 = vmul.f32 %v261, 0.01
  %v342 = vmul.f32 %v263, 0.01
  %v343 = vmul.f32 %v265, 0.01
  %v344 = vmul.f32 %v267, 0.01
  %v345 = vmul.f32 %v271, 0.01
  %v346 = vmul.f32 %v273, 0.01
  %v347 = vmul.f32 %v275, 0.01
  %v348 = vmul.f32 %v277, 0.01
  %v349 = vmul.f32 %v281, 0.01
  %v350 = vmul.f32 %v283, 0.01
  %v351 = vmul.f32 %v285, 0.01
  %v352 = vmul.f32 %v287, 0.01
  %v353 = vsel %vm289, %v211, %v321
  %v354 = vsel %vm290, %v213, %v322
  %v355 = vsel %vm291, %v215, %v323
  %v356 = vsel %vm292, %v217, %v324
  %v357 = vsel %vm293, %v221, %v325
  %v358 = vsel %vm294, %v223, %v326
  %v359 = vsel %vm295, %v225, %v327
  %v360 = vsel %vm296, %v227, %v328
  %v361 = vsel %vm297, %v231, %v329
  %v362 = vsel %vm298, %v233, %v330
  %v363 = vsel %vm299, %v235, %v331
  %v364 = vsel %vm300, %v237, %v332
  %v365 = vsel %vm301, %v241, %v333
  %v366 = vsel %vm302, %v243, %v334
  %v367 = vsel %vm303, %v245, %v335
  %v368 = vsel %vm304, %v247, %v336
  %v369 = vsel %vm305, %v251, %v337
  %v370 = vsel %vm306, %v253, %v338
  %v371 = vsel %vm307, %v255, %v339
  %v372 = vsel %vm308, %v257, %v340
  %v373 = vsel %vm309, %v261, %v341
  %v374 = vsel %vm310, %v263, %v342
  %v375 = vsel %vm311, %v265, %v343
  %v376 = vsel %vm312, %v267, %v344
  %v377 = vsel %vm313, %v271, %v345
  %v378 = vsel %vm314, %v273, %v346
  %v379 = vsel %vm315, %v275, %v347
  %v380 = vsel %vm316, %v277, %v348
  %v381 = vsel %vm317, %v281, %v349
  %v382 = vsel %vm318, %v283, %v350
  %v383 = vsel %vm319, %v285, %v351
  %v384 = vsel %vm320, %v287, %v352
  %v385 = vpack.c.bf16 %v355, %v353
  %v386 = vpack.c.bf16 %v356, %v354
  %v387 = vpack.c.bf16 %v359, %v357
  %v388 = vpack.c.bf16 %v360, %v358
  %v389 = vpack.c.bf16 %v363, %v361
  %v390 = vpack.c.bf16 %v364, %v362
  %v391 = vpack.c.bf16 %v367, %v365
  %v392 = vpack.c.bf16 %v368, %v366
  %v393 = vpack.c.bf16 %v371, %v369
  %v394 = vpack.c.bf16 %v372, %v370
  %v395 = vpack.c.bf16 %v375, %v373
  %v396 = vpack.c.bf16 %v376, %v374
  %v397 = vpack.c.bf16 %v379, %v377
  %v398 = vpack.c.bf16 %v380, %v378
  %v399 = vpack.c.bf16 %v383, %v381
  %v400 = vpack.c.bf16 %v384, %v382
  %v401 = vld [vmem:[%s4] sm:$0xf]
  %v402 = vld [vmem:[%s4 + $0x4] sm:$0xf]
  %v403 = vld [vmem:[%s4 + $0x8] sm:$0xf]
  %v404 = vld [vmem:[%s4 + $0xc] sm:$0xf]
  %v405 = vld [vmem:[%s4 + $0x10] sm:$0xf]
  %v406 = vld [vmem:[%s4 + $0x14] sm:$0xf]
  %v407 = vld [vmem:[%s4 + $0x18] sm:$0xf]
  %v408 = vld [vmem:[%s4 + $0x1c] sm:$0xf]
  %v409 = vld [vmem:[%s4 + $0x20] sm:$0xf]
  %v410 = vld [vmem:[%s4 + $0x24] sm:$0xf]
  %v411 = vld [vmem:[%s4 + $0x28] sm:$0xf]
  %v412 = vld [vmem:[%s4 + $0x2c] sm:$0xf]
  %v413 = vld [vmem:[%s4 + $0x30] sm:$0xf]
  %v414 = vld [vmem:[%s4 + $0x34] sm:$0xf]
  %v415 = vld [vmem:[%s4 + $0x38] sm:$0xf]
  %v416 = vld [vmem:[%s4 + $0x3c] sm:$0xf]
  %v417 = vld [vmem:[%s4 + $0x40] sm:$0xf]
  %v418 = vld [vmem:[%s4 + $0x44] sm:$0xf]
  %v419 = vld [vmem:[%s4 + $0x48] sm:$0xf]
  %v420 = vld [vmem:[%s4 + $0x4c] sm:$0xf]
  %v421 = vld [vmem:[%s4 + $0x50] sm:$0xf]
  %v422 = vld [vmem:[%s4 + $0x54] sm:$0xf]
  %v423 = vld [vmem:[%s4 + $0x58] sm:$0xf]
  %v424 = vld [vmem:[%s4 + $0x5c] sm:$0xf]
  %v425 = vld [vmem:[%s4 + $0x60] sm:$0xf]
  %v426 = vld [vmem:[%s4 + $0x64] sm:$0xf]
  %v427 = vld [vmem:[%s4 + $0x68] sm:$0xf]
  %v428 = vld [vmem:[%s4 + $0x6c] sm:$0xf]
  %v429 = vld [vmem:[%s4 + $0x70] sm:$0xf]
  %v430 = vld [vmem:[%s4 + $0x74] sm:$0xf]
  %v431 = vld [vmem:[%s4 + $0x78] sm:$0xf]
  %v432 = vld [vmem:[%s4 + $0x7c] sm:$0xf]
  %v433 = vld [vmem:[%s5] sm:$0x1]
  %v435 = vlaneseq
  %v436 = vshrl.u32 %v435, 7
  %v437 = vsub.s32 0, %v436
  %v438 = vrot.slane %v433, %v437
  %v472 = vunpack.c.l.b16 %v401
  %v473 = vunpack.c.l.b16 %v402
  %v474 = vunpack.c.l.b16 %v403
  %v475 = vunpack.c.l.b16 %v404
  %v476 = vunpack.c.l.b16 %v405
  %v477 = vunpack.c.l.b16 %v406
  %v478 = vunpack.c.l.b16 %v407
  %v479 = vunpack.c.l.b16 %v408
  %v480 = vunpack.c.l.b16 %v409
  %v481 = vunpack.c.l.b16 %v410
  %v482 = vunpack.c.l.b16 %v411
  %v483 = vunpack.c.l.b16 %v412
  %v484 = vunpack.c.l.b16 %v413
  %v485 = vunpack.c.l.b16 %v414
  %v486 = vunpack.c.l.b16 %v415
  %v487 = vunpack.c.l.b16 %v416
  %v488 = vunpack.c.l.b16 %v417
  %v489 = vunpack.c.l.b16 %v418
  %v490 = vunpack.c.l.b16 %v419
  %v491 = vunpack.c.l.b16 %v420
  %v492 = vunpack.c.l.b16 %v421
  %v493 = vunpack.c.l.b16 %v422
  %v494 = vunpack.c.l.b16 %v423
  %v495 = vunpack.c.l.b16 %v424
  %v496 = vunpack.c.l.b16 %v425
  %v497 = vunpack.c.l.b16 %v426
  %v498 = vunpack.c.l.b16 %v427
  %v499 = vunpack.c.l.b16 %v428
  %v500 = vunpack.c.l.b16 %v429
  %v501 = vunpack.c.l.b16 %v430
  %v502 = vunpack.c.l.b16 %v431
  %v503 = vunpack.c.l.b16 %v432
  %v504 = vpack.c.b16 %v473, %v472
  %v505 = vpack.c.b16 %v475, %v474
  %v506 = vpack.c.b16 %v477, %v476
  %v507 = vpack.c.b16 %v479, %v478
  %v508 = vpack.c.b16 %v481, %v480
  %v509 = vpack.c.b16 %v483, %v482
  %v510 = vpack.c.b16 %v485, %v484
  %v511 = vpack.c.b16 %v487, %v486
  %v512 = vpack.c.b16 %v489, %v488
  %v513 = vpack.c.b16 %v491, %v490
  %v514 = vpack.c.b16 %v493, %v492
  %v515 = vpack.c.b16 %v495, %v494
  %v516 = vpack.c.b16 %v497, %v496
  %v517 = vpack.c.b16 %v499, %v498
  %v518 = vpack.c.b16 %v501, %v500
  %v519 = vpack.c.b16 %v503, %v502
  %536 = vmatprep.subr.bf16.mxu0 0
  %537 = vmatpush1.bf16.msra.mxu0 %v511
  %538 = vmatprep.subr.bf16.mxu0 0
  %539 = vmatpush1.bf16.msra.mxu0 %v510
  %540 = vmatprep.subr.bf16.mxu0 0
  %541 = vmatpush1.bf16.msra.mxu0 %v509
  %542 = vmatprep.subr.bf16.mxu0 0
  %543 = vmatpush1.bf16.msra.mxu0 %v508
  %544 = vmatprep.subr.bf16.mxu0 0
  %545 = vmatpush1.bf16.msra.mxu0 %v507
  %546 = vmatprep.subr.bf16.mxu0 0
  %547 = vmatpush1.bf16.msra.mxu0 %v506
  %548 = vmatprep.subr.bf16.mxu0 0
  %549 = vmatpush1.bf16.msra.mxu0 %v505
  %550 = vmatprep.subr.bf16.mxu0 0
  %551 = vmatpush1.bf16.msra.mxu0 %v504
  %552 = vmatprep.subr.bf16.mxu0 0
  %553 = vmatpush2.bf16.msra.mxu0 %v519
  %554 = vmatprep.subr.bf16.mxu0 0
  %555 = vmatpush2.bf16.msra.mxu0 %v518
  %556 = vmatprep.subr.bf16.mxu0 0
  %557 = vmatpush2.bf16.msra.mxu0 %v517
  %558 = vmatprep.subr.bf16.mxu0 0
  %559 = vmatpush2.bf16.msra.mxu0 %v516
  %560 = vmatprep.subr.bf16.mxu0 0
  %561 = vmatpush2.bf16.msra.mxu0 %v515
  %562 = vmatprep.subr.bf16.mxu0 0
  %563 = vmatpush2.bf16.msra.mxu0 %v514
  %564 = vmatprep.subr.bf16.mxu0 0
  %565 = vmatpush2.bf16.msra.mxu0 %v513
  %566 = vmatprep.subr.bf16.mxu0 0
  %567 = vmatpush2.bf16.msra.mxu0 %v512
  %568 = vmatprep.mubr.bf16.mxu0 %v386
  %569 = vmatmul.mubr.bf16.gmra.mxu0 %v385
  %v570 = vpop.f32.mrf.mxu0
  %v571 = vadd.f32 %v438, %v570
  %v572 = vpop.f32.mrf.mxu0
  %v573 = vpop.f32.mrf.mxu0
  %v574 = vadd.f32 %v438, %v573
  %v575 = vpop.f32.mrf.mxu0
  %576 = vmatprep.mubr.bf16.mxu0 %v388
  %577 = vmatmul.mubr.bf16.gmra.mxu0 %v387
  %v578 = vpop.f32.mrf.mxu0
  %v579 = vadd.f32 %v438, %v578
  %v580 = vpop.f32.mrf.mxu0
  %v581 = vpop.f32.mrf.mxu0
  %v582 = vadd.f32 %v438, %v581
  %v583 = vpop.f32.mrf.mxu0
  %584 = vmatprep.mubr.bf16.mxu0 %v390
  %585 = vmatmul.mubr.bf16.gmra.mxu0 %v389
  %v586 = vpop.f32.mrf.mxu0
  %v587 = vadd.f32 %v438, %v586
  %v588 = vpop.f32.mrf.mxu0
  %v589 = vpop.f32.mrf.mxu0
  %v590 = vadd.f32 %v438, %v589
  %v591 = vpop.f32.mrf.mxu0
  %592 = vmatprep.mubr.bf16.mxu0 %v392
  %593 = vmatmul.mubr.bf16.gmra.mxu0 %v391
  %v594 = vpop.f32.mrf.mxu0
  %v595 = vadd.f32 %v438, %v594
  %v596 = vpop.f32.mrf.mxu0
  %v597 = vpop.f32.mrf.mxu0
  %v598 = vadd.f32 %v438, %v597
  %v599 = vpop.f32.mrf.mxu0
  %600 = vmatprep.mubr.bf16.mxu0 %v394
  %601 = vmatmul.mubr.bf16.gmra.mxu0 %v393
  %v602 = vpop.f32.mrf.mxu0
  %v603 = vadd.f32 %v438, %v602
  %v604 = vpop.f32.mrf.mxu0
  %v605 = vpop.f32.mrf.mxu0
  %v606 = vadd.f32 %v438, %v605
  %v607 = vpop.f32.mrf.mxu0
  %608 = vmatprep.mubr.bf16.mxu0 %v396
  %609 = vmatmul.mubr.bf16.gmra.mxu0 %v395
  %v610 = vpop.f32.mrf.mxu0
  %v611 = vadd.f32 %v438, %v610
  %v612 = vpop.f32.mrf.mxu0
  %v613 = vpop.f32.mrf.mxu0
  %v614 = vadd.f32 %v438, %v613
  %v615 = vpop.f32.mrf.mxu0
  %616 = vmatprep.mubr.bf16.mxu0 %v398
  %617 = vmatmul.mubr.bf16.gmra.mxu0 %v397
  %v618 = vpop.f32.mrf.mxu0
  %v619 = vadd.f32 %v438, %v618
  %v620 = vpop.f32.mrf.mxu0
  %v621 = vpop.f32.mrf.mxu0
  %v622 = vadd.f32 %v438, %v621
  %v623 = vpop.f32.mrf.mxu0
  %624 = vmatprep.mubr.bf16.mxu0 %v400
  %625 = vmatmul.mubr.bf16.gmra.mxu0 %v399
  %v626 = vpop.f32.mrf.mxu0
  %v627 = vadd.f32 %v438, %v626
  %v628 = vpop.f32.mrf.mxu0
  %v629 = vpop.f32.mrf.mxu0
  %v630 = vadd.f32 %v438, %v629
  %v631 = vpop.f32.mrf.mxu0
  %632 = vdwg.mxu0
  %vm633 = vcmp.ge.f32.partialorder %v571, 0.0
  %vm634 = vcmp.ge.f32.partialorder %v574, 0.0
  %vm635 = vcmp.ge.f32.partialorder %v579, 0.0
  %vm636 = vcmp.ge.f32.partialorder %v582, 0.0
  %vm637 = vcmp.ge.f32.partialorder %v587, 0.0
  %vm638 = vcmp.ge.f32.partialorder %v590, 0.0
  %vm639 = vcmp.ge.f32.partialorder %v595, 0.0
  %vm640 = vcmp.ge.f32.partialorder %v598, 0.0
  %vm641 = vcmp.ge.f32.partialorder %v603, 0.0
  %vm642 = vcmp.ge.f32.partialorder %v606, 0.0
  %vm643 = vcmp.ge.f32.partialorder %v611, 0.0
  %vm644 = vcmp.ge.f32.partialorder %v614, 0.0
  %vm645 = vcmp.ge.f32.partialorder %v619, 0.0
  %vm646 = vcmp.ge.f32.partialorder %v622, 0.0
  %vm647 = vcmp.ge.f32.partialorder %v627, 0.0
  %vm648 = vcmp.ge.f32.partialorder %v630, 0.0
  %v649 = vmul.f32 %v571, 0.01
  %v650 = vmul.f32 %v574, 0.01
  %v651 = vmul.f32 %v579, 0.01
  %v652 = vmul.f32 %v582, 0.01
  %v653 = vmul.f32 %v587, 0.01
  %v654 = vmul.f32 %v590, 0.01
  %v655 = vmul.f32 %v595, 0.01
  %v656 = vmul.f32 %v598, 0.01
  %v657 = vmul.f32 %v603, 0.01
  %v658 = vmul.f32 %v606, 0.01
  %v659 = vmul.f32 %v611, 0.01
  %v660 = vmul.f32 %v614, 0.01
  %v661 = vmul.f32 %v619, 0.01
  %v662 = vmul.f32 %v622, 0.01
  %v663 = vmul.f32 %v627, 0.01
  %v664 = vmul.f32 %v630, 0.01
  %v665 = vsel %vm633, %v571, %v649
  %v666 = vsel %vm634, %v574, %v650
  %v667 = vsel %vm635, %v579, %v651
  %v668 = vsel %vm636, %v582, %v652
  %v669 = vsel %vm637, %v587, %v653
  %v670 = vsel %vm638, %v590, %v654
  %v671 = vsel %vm639, %v595, %v655
  %v672 = vsel %vm640, %v598, %v656
  %v673 = vsel %vm641, %v603, %v657
  %v674 = vsel %vm642, %v606, %v658
  %v675 = vsel %vm643, %v611, %v659
  %v676 = vsel %vm644, %v614, %v660
  %v677 = vsel %vm645, %v619, %v661
  %v678 = vsel %vm646, %v622, %v662
  %v679 = vsel %vm647, %v627, %v663
  %v680 = vsel %vm648, %v630, %v664
  %v681 = vpack.c.bf16 %v666, %v665
  %v682 = vpack.c.bf16 %v668, %v667
  %v683 = vpack.c.bf16 %v670, %v669
  %v684 = vpack.c.bf16 %v672, %v671
  %v685 = vpack.c.bf16 %v674, %v673
  %v686 = vpack.c.bf16 %v676, %v675
  %v687 = vpack.c.bf16 %v678, %v677
  %v688 = vpack.c.bf16 %v680, %v679
  %v689 = vld [vmem:[%s6] sm:$0xf]
  %v690 = vld [vmem:[%s6 + $0x4] sm:$0xf]
  %v691 = vld [vmem:[%s6 + $0x8] sm:$0xf]
  %v692 = vld [vmem:[%s6 + $0xc] sm:$0xf]
  %v693 = vld [vmem:[%s7] sm:$0x1]
  %v695 = vlaneseq
  %v696 = vshrl.u32 %v695, 7
  %v697 = vsub.s32 0, %v696
  %v698 = vrot.slane %v693, %v697
  %v704 = vunpack.c.l.b16 %v689
  %v705 = vunpack.c.l.b16 %v690
  %v706 = vunpack.c.l.b16 %v691
  %v707 = vunpack.c.l.b16 %v692
  %v708 = vpack.c.b16 %v705, %v704
  %v709 = vpack.c.b16 %v707, %v706
  %vm712 = vcmask 261120
  %v714 = vsel %vm712, %v681, 0
  %v717 = vsel %vm712, %v682, 0
  %v720 = vsel %vm712, %v683, 0
  %v723 = vsel %vm712, %v684, 0
  %v726 = vsel %vm712, %v685, 0
  %v729 = vsel %vm712, %v686, 0
  %v732 = vsel %vm712, %v687, 0
  %v735 = vsel %vm712, %v688, 0
  %737 = vmatprep.subr.bf16.mxu0 0
  %738 = vmatpush1.bf16.msra.mxu0 0
  %739 = vmatprep.subr.bf16.mxu0 0
  %740 = vmatpush1.bf16.msra.mxu0 0
  %741 = vmatprep.subr.bf16.mxu0 0
  %742 = vmatpush1.bf16.msra.mxu0 0
  %743 = vmatprep.subr.bf16.mxu0 0
  %744 = vmatpush1.bf16.msra.mxu0 0
  %745 = vmatprep.subr.bf16.mxu0 0
  %746 = vmatpush1.bf16.msra.mxu0 0
  %747 = vmatprep.subr.bf16.mxu0 0
  %748 = vmatpush1.bf16.msra.mxu0 0
  %749 = vmatprep.subr.bf16.mxu0 0
  %750 = vmatpush1.bf16.msra.mxu0 %v709
  %751 = vmatprep.subr.bf16.mxu0 0
  %752 = vmatpush1.bf16.msra.mxu0 %v708
  %753 = vmatprep.subr.bf16.mxu0 0
  %754 = vmatpush2.bf16.msra.mxu0 0
  %755 = vmatprep.subr.bf16.mxu0 0
  %756 = vmatpush2.bf16.msra.mxu0 0
  %757 = vmatprep.subr.bf16.mxu0 0
  %758 = vmatpush2.bf16.msra.mxu0 0
  %759 = vmatprep.subr.bf16.mxu0 0
  %760 = vmatpush2.bf16.msra.mxu0 0
  %761 = vmatprep.subr.bf16.mxu0 0
  %762 = vmatpush2.bf16.msra.mxu0 0
  %763 = vmatprep.subr.bf16.mxu0 0
  %764 = vmatpush2.bf16.msra.mxu0 0
  %765 = vmatprep.subr.bf16.mxu0 0
  %766 = vmatpush2.bf16.msra.mxu0 0
  %767 = vmatprep.subr.bf16.mxu0 0
  %768 = vmatpush2.bf16.msra.mxu0 0
  %769 = vmatprep.mubr.bf16.mxu0 0
  %770 = vmatmul.mubr.bf16.gmra.mxu0 %v714
  %v771 = vpop.f32.mrf.mxu0
  %v772 = vadd.f32 %v698, %v771
  %v773 = vpop.f32.mrf.mxu0
  %v774 = vpop.f32.mrf.mxu0
  %v775 = vadd.f32 %v698, %v774
  %v776 = vpop.f32.mrf.mxu0
  %777 = vmatprep.mubr.bf16.mxu0 0
  %778 = vmatmul.mubr.bf16.gmra.mxu0 %v717
  %v779 = vpop.f32.mrf.mxu0
  %v780 = vadd.f32 %v698, %v779
  %v781 = vpop.f32.mrf.mxu0
  %v782 = vpop.f32.mrf.mxu0
  %v783 = vadd.f32 %v698, %v782
  %v784 = vpop.f32.mrf.mxu0
  %785 = vmatprep.mubr.bf16.mxu0 0
  %786 = vmatmul.mubr.bf16.gmra.mxu0 %v720
  %v787 = vpop.f32.mrf.mxu0
  %v788 = vadd.f32 %v698, %v787
  %v789 = vpop.f32.mrf.mxu0
  %v790 = vpop.f32.mrf.mxu0
  %v791 = vadd.f32 %v698, %v790
  %v792 = vpop.f32.mrf.mxu0
  %793 = vmatprep.mubr.bf16.mxu0 0
  %794 = vmatmul.mubr.bf16.gmra.mxu0 %v723
  %v795 = vpop.f32.mrf.mxu0
  %v796 = vadd.f32 %v698, %v795
  %v797 = vpop.f32.mrf.mxu0
  %v798 = vpop.f32.mrf.mxu0
  %v799 = vadd.f32 %v698, %v798
  %v800 = vpop.f32.mrf.mxu0
  %801 = vmatprep.mubr.bf16.mxu0 0
  %802 = vmatmul.mubr.bf16.gmra.mxu0 %v726
  %v803 = vpop.f32.mrf.mxu0
  %v804 = vadd.f32 %v698, %v803
  %v805 = vpop.f32.mrf.mxu0
  %v806 = vpop.f32.mrf.mxu0
  %v807 = vadd.f32 %v698, %v806
  %v808 = vpop.f32.mrf.mxu0
  %809 = vmatprep.mubr.bf16.mxu0 0
  %810 = vmatmul.mubr.bf16.gmra.mxu0 %v729
  %v811 = vpop.f32.mrf.mxu0
  %v812 = vadd.f32 %v698, %v811
  %v813 = vpop.f32.mrf.mxu0
  %v814 = vpop.f32.mrf.mxu0
  %v815 = vadd.f32 %v698, %v814
  %v816 = vpop.f32.mrf.mxu0
  %817 = vmatprep.mubr.bf16.mxu0 0
  %818 = vmatmul.mubr.bf16.gmra.mxu0 %v732
  %v819 = vpop.f32.mrf.mxu0
  %v820 = vadd.f32 %v698, %v819
  %v821 = vpop.f32.mrf.mxu0
  %v822 = vpop.f32.mrf.mxu0
  %v823 = vadd.f32 %v698, %v822
  %v824 = vpop.f32.mrf.mxu0
  %825 = vmatprep.mubr.bf16.mxu0 0
  %826 = vmatmul.mubr.bf16.gmra.mxu0 %v735
  %v827 = vpop.f32.mrf.mxu0
  %v828 = vadd.f32 %v698, %v827
  %v829 = vpop.f32.mrf.mxu0
  %v830 = vpop.f32.mrf.mxu0
  %v831 = vadd.f32 %v698, %v830
  %v832 = vpop.f32.mrf.mxu0
  %833 = vdwg.mxu0
  %v834 = vmul.f32 %v772, 0.5
  %v835 = vmul.f32 %v775, 0.5
  %v836 = vmul.f32 %v780, 0.5
  %v837 = vmul.f32 %v783, 0.5
  %v838 = vmul.f32 %v788, 0.5
  %v839 = vmul.f32 %v791, 0.5
  %v840 = vmul.f32 %v796, 0.5
  %v841 = vmul.f32 %v799, 0.5
  %v842 = vmul.f32 %v804, 0.5
  %v843 = vmul.f32 %v807, 0.5
  %v844 = vmul.f32 %v812, 0.5
  %v845 = vmul.f32 %v815, 0.5
  %v846 = vmul.f32 %v820, 0.5
  %v847 = vmul.f32 %v823, 0.5
  %v848 = vmul.f32 %v828, 0.5
  %v849 = vmul.f32 %v831, 0.5
  %v850 = vmul.f32 %v834, 1.442695
  %v851 = vpow.pop %v850
  %v852 = vmul.f32 %v835, 1.442695
  %v853 = vpow.pop %v852
  %v854 = vmul.f32 %v836, 1.442695
  %v855 = vpow.pop %v854
  %v856 = vmul.f32 %v837, 1.442695
  %v857 = vpow.pop %v856
  %v858 = vmul.f32 %v838, 1.442695
  %v859 = vpow.pop %v858
  %v860 = vmul.f32 %v839, 1.442695
  %v861 = vpow.pop %v860
  %v862 = vmul.f32 %v840, 1.442695
  %v863 = vpow.pop %v862
  %v864 = vmul.f32 %v841, 1.442695
  %v865 = vpow.pop %v864
  %v866 = vmul.f32 %v842, 1.442695
  %v867 = vpow.pop %v866
  %v868 = vmul.f32 %v843, 1.442695
  %v869 = vpow.pop %v868
  %v870 = vmul.f32 %v844, 1.442695
  %v871 = vpow.pop %v870
  %v872 = vmul.f32 %v845, 1.442695
  %v873 = vpow.pop %v872
  %v874 = vmul.f32 %v846, 1.442695
  %v875 = vpow.pop %v874
  %v876 = vmul.f32 %v847, 1.442695
  %v877 = vpow.pop %v876
  %v878 = vmul.f32 %v848, 1.442695
  %v879 = vpow.pop %v878
  %v880 = vmul.f32 %v849, 1.442695
  %v881 = vpow.pop %v880
  %v882 = vld [vmem:[%s1] sm:$0xff]
  %v883 = vld [vmem:[%s1 + $0x8] sm:$0xff]
  %v884 = vld [vmem:[%s1 + $0x10] sm:$0xff]
  %v885 = vld [vmem:[%s1 + $0x18] sm:$0xff]
  %v886 = vld [vmem:[%s1 + $0x20] sm:$0xff]
  %v887 = vld [vmem:[%s1 + $0x28] sm:$0xff]
  %v888 = vld [vmem:[%s1 + $0x30] sm:$0xff]
  %v889 = vld [vmem:[%s1 + $0x38] sm:$0xff]
  %v890 = vld [vmem:[%s1 + $0x40] sm:$0xff]
  %v891 = vld [vmem:[%s1 + $0x48] sm:$0xff]
  %v892 = vld [vmem:[%s1 + $0x50] sm:$0xff]
  %v893 = vld [vmem:[%s1 + $0x58] sm:$0xff]
  %v894 = vld [vmem:[%s1 + $0x60] sm:$0xff]
  %v895 = vld [vmem:[%s1 + $0x68] sm:$0xff]
  %v896 = vld [vmem:[%s1 + $0x70] sm:$0xff]
  %v897 = vld [vmem:[%s1 + $0x78] sm:$0xff]
  %914 = vrot.lane.b32.xlu0 %v851, 112
  %v915 = vpop.permute.xlu0 %914
  %916 = vrot.lane.b32.xlu0 %v853, 112
  %v917 = vpop.permute.xlu0 %916
  %918 = vrot.lane.b32.xlu0 %v855, 112
  %v919 = vpop.permute.xlu0 %918
  %920 = vrot.lane.b32.xlu0 %v857, 112
  %v921 = vpop.permute.xlu0 %920
  %922 = vrot.lane.b32.xlu0 %v859, 112
  %v923 = vpop.permute.xlu0 %922
  %924 = vrot.lane.b32.xlu0 %v861, 112
  %v925 = vpop.permute.xlu0 %924
  %926 = vrot.lane.b32.xlu0 %v863, 112
  %v927 = vpop.permute.xlu0 %926
  %928 = vrot.lane.b32.xlu0 %v865, 112
  %v929 = vpop.permute.xlu0 %928
  %930 = vrot.lane.b32.xlu0 %v867, 112
  %v931 = vpop.permute.xlu0 %930
  %932 = vrot.lane.b32.xlu0 %v869, 112
  %v933 = vpop.permute.xlu0 %932
  %934 = vrot.lane.b32.xlu0 %v871, 112
  %v935 = vpop.permute.xlu0 %934
  %936 = vrot.lane.b32.xlu0 %v873, 112
  %v937 = vpop.permute.xlu0 %936
  %938 = vrot.lane.b32.xlu0 %v875, 112
  %v939 = vpop.permute.xlu0 %938
  %940 = vrot.lane.b32.xlu0 %v877, 112
  %v941 = vpop.permute.xlu0 %940
  %942 = vrot.lane.b32.xlu0 %v879, 112
  %v943 = vpop.permute.xlu0 %942
  %944 = vrot.lane.b32.xlu0 %v881, 112
  %v945 = vpop.permute.xlu0 %944
  %v962 = vmul.f32 %v882, %v915
  %v963 = vmul.f32 %v883, %v917
  %v964 = vmul.f32 %v884, %v919
  %v965 = vmul.f32 %v885, %v921
  %v966 = vmul.f32 %v886, %v923
  %v967 = vmul.f32 %v887, %v925
  %v968 = vmul.f32 %v888, %v927
  %v969 = vmul.f32 %v889, %v929
  %v970 = vmul.f32 %v890, %v931
  %v971 = vmul.f32 %v891, %v933
  %v972 = vmul.f32 %v892, %v935
  %v973 = vmul.f32 %v893, %v937
  %v974 = vmul.f32 %v894, %v939
  %v975 = vmul.f32 %v895, %v941
  %v976 = vmul.f32 %v896, %v943
  %v977 = vmul.f32 %v897, %v945
  %v978 = vadd.f32 %v772, %v962
  %v979 = vadd.f32 %v775, %v963
  %v980 = vadd.f32 %v780, %v964
  %v981 = vadd.f32 %v783, %v965
  %v982 = vadd.f32 %v788, %v966
  %v983 = vadd.f32 %v791, %v967
  %v984 = vadd.f32 %v796, %v968
  %v985 = vadd.f32 %v799, %v969
  %v986 = vadd.f32 %v804, %v970
  %v987 = vadd.f32 %v807, %v971
  %v988 = vadd.f32 %v812, %v972
  %v989 = vadd.f32 %v815, %v973
  %v990 = vadd.f32 %v820, %v974
  %v991 = vadd.f32 %v823, %v975
  %v992 = vadd.f32 %v828, %v976
  %v993 = vadd.f32 %v831, %v977
  %v994 = vpack.c.bf16 %v979, %v978
  %v995 = vpack.c.bf16 %v981, %v980
  %v996 = vpack.c.bf16 %v983, %v982
  %v997 = vpack.c.bf16 %v985, %v984
  %v998 = vpack.c.bf16 %v987, %v986
  %v999 = vpack.c.bf16 %v989, %v988
  %v1000 = vpack.c.bf16 %v991, %v990
  %v1001 = vpack.c.bf16 %v993, %v992
  %v1002 = vld [vmem:[%s8] sm:$0xff]
  %v1003 = vld [vmem:[%s8 + $0x8] sm:$0xff]
  %v1004 = vld [vmem:[%s9] sm:$0x3]
  %v1006 = vlaneseq
  %v1007 = vshrl.u32 %v1006, 7
  %v1008 = vsub.s32 0, %v1007
  %v1009 = vrot.slane %v1004, %v1008
  %v1010 = vlaneseq
  %v1011 = vshrl.u32 %v1010, 7
  %v1012 = vsub.s32 1, %v1011
  %v1013 = vrot.slane %v1004, %v1012
  %v1018 = vunpack.c.l.b16 %v1002
  %v1019 = vunpack.c.h.b16 %v1002
  %v1020 = vunpack.c.l.b16 %v1003
  %v1021 = vunpack.c.h.b16 %v1003
  %v1022 = vpack.c.b16 %v1020, %v1018
  %v1023 = vpack.c.b16 %v1021, %v1019
  %vm1026 = vcmask 130048
  %v1028 = vsel %vm1026, %v994, 0
  %v1031 = vsel %vm1026, %v995, 0
  %v1034 = vsel %vm1026, %v996, 0
  %v1037 = vsel %vm1026, %v997, 0
  %v1040 = vsel %vm1026, %v998, 0
  %v1043 = vsel %vm1026, %v999, 0
  %v1046 = vsel %vm1026, %v1000, 0
  %v1049 = vsel %vm1026, %v1001, 0
  %1051 = vmatprep.subr.bf16.mxu0 0
  %1052 = vmatpush1.bf16.msra.mxu0 0
  %1053 = vmatprep.subr.bf16.mxu0 0
  %1054 = vmatpush1.bf16.msra.mxu0 0
  %1055 = vmatprep.subr.bf16.mxu0 0
  %1056 = vmatpush1.bf16.msra.mxu0 0
  %1057 = vmatprep.subr.bf16.mxu0 0
  %1058 = vmatpush1.bf16.msra.mxu0 0
  %1059 = vmatprep.subr.bf16.mxu0 0
  %1060 = vmatpush1.bf16.msra.mxu0 0
  %1061 = vmatprep.subr.bf16.mxu0 0
  %1062 = vmatpush1.bf16.msra.mxu0 0
  %1063 = vmatprep.subr.bf16.mxu0 0
  %1064 = vmatpush1.bf16.msra.mxu0 0
  %1065 = vmatprep.subr.bf16.mxu0 %v1023
  %1066 = vmatpush1.bf16.msra.mxu0 %v1022
  %1067 = vmatprep.subr.bf16.mxu0 0
  %1068 = vmatpush2.bf16.msra.mxu0 0
  %1069 = vmatprep.subr.bf16.mxu0 0
  %1070 = vmatpush2.bf16.msra.mxu0 0
  %1071 = vmatprep.subr.bf16.mxu0 0
  %1072 = vmatpush2.bf16.msra.mxu0 0
  %1073 = vmatprep.subr.bf16.mxu0 0
  %1074 = vmatpush2.bf16.msra.mxu0 0
  %1075 = vmatprep.subr.bf16.mxu0 0
  %1076 = vmatpush2.bf16.msra.mxu0 0
  %1077 = vmatprep.subr.bf16.mxu0 0
  %1078 = vmatpush2.bf16.msra.mxu0 0
  %1079 = vmatprep.subr.bf16.mxu0 0
  %1080 = vmatpush2.bf16.msra.mxu0 0
  %1081 = vmatprep.subr.bf16.mxu0 0
  %1082 = vmatpush2.bf16.msra.mxu0 0
  %1083 = vmatprep.mubr.bf16.mxu0 0
  %1084 = vmatmul.mubr.bf16.gmra.mxu0 %v1028
  %v1085 = vpop.f32.mrf.mxu0
  %v1086 = vadd.f32 %v1009, %v1085
  %v1087 = vpop.f32.mrf.mxu0
  %v1088 = vadd.f32 %v1013, %v1087
  %v1089 = vpop.f32.mrf.mxu0
  %v1090 = vadd.f32 %v1009, %v1089
  %v1091 = vpop.f32.mrf.mxu0
  %v1092 = vadd.f32 %v1013, %v1091
  %1093 = vmatprep.mubr.bf16.mxu0 0
  %1094 = vmatmul.mubr.bf16.gmra.mxu0 %v1031
  %v1095 = vpop.f32.mrf.mxu0
  %v1096 = vadd.f32 %v1009, %v1095
  %v1097 = vpop.f32.mrf.mxu0
  %v1098 = vadd.f32 %v1013, %v1097
  %v1099 = vpop.f32.mrf.mxu0
  %v1100 = vadd.f32 %v1009, %v1099
  %v1101 = vpop.f32.mrf.mxu0
  %v1102 = vadd.f32 %v1013, %v1101
  %1103 = vmatprep.mubr.bf16.mxu0 0
  %1104 = vmatmul.mubr.bf16.gmra.mxu0 %v1034
  %v1105 = vpop.f32.mrf.mxu0
  %v1106 = vadd.f32 %v1009, %v1105
  %v1107 = vpop.f32.mrf.mxu0
  %v1108 = vadd.f32 %v1013, %v1107
  %v1109 = vpop.f32.mrf.mxu0
  %v1110 = vadd.f32 %v1009, %v1109
  %v1111 = vpop.f32.mrf.mxu0
  %v1112 = vadd.f32 %v1013, %v1111
  %1113 = vmatprep.mubr.bf16.mxu0 0
  %1114 = vmatmul.mubr.bf16.gmra.mxu0 %v1037
  %v1115 = vpop.f32.mrf.mxu0
  %v1116 = vadd.f32 %v1009, %v1115
  %v1117 = vpop.f32.mrf.mxu0
  %v1118 = vadd.f32 %v1013, %v1117
  %v1119 = vpop.f32.mrf.mxu0
  %v1120 = vadd.f32 %v1009, %v1119
  %v1121 = vpop.f32.mrf.mxu0
  %v1122 = vadd.f32 %v1013, %v1121
  %1123 = vmatprep.mubr.bf16.mxu0 0
  %1124 = vmatmul.mubr.bf16.gmra.mxu0 %v1040
  %v1125 = vpop.f32.mrf.mxu0
  %v1126 = vadd.f32 %v1009, %v1125
  %v1127 = vpop.f32.mrf.mxu0
  %v1128 = vadd.f32 %v1013, %v1127
  %v1129 = vpop.f32.mrf.mxu0
  %v1130 = vadd.f32 %v1009, %v1129
  %v1131 = vpop.f32.mrf.mxu0
  %v1132 = vadd.f32 %v1013, %v1131
  %1133 = vmatprep.mubr.bf16.mxu0 0
  %1134 = vmatmul.mubr.bf16.gmra.mxu0 %v1043
  %v1135 = vpop.f32.mrf.mxu0
  %v1136 = vadd.f32 %v1009, %v1135
  %v1137 = vpop.f32.mrf.mxu0
  %v1138 = vadd.f32 %v1013, %v1137
  %v1139 = vpop.f32.mrf.mxu0
  %v1140 = vadd.f32 %v1009, %v1139
  %v1141 = vpop.f32.mrf.mxu0
  %v1142 = vadd.f32 %v1013, %v1141
  %1143 = vmatprep.mubr.bf16.mxu0 0
  %1144 = vmatmul.mubr.bf16.gmra.mxu0 %v1046
  %v1145 = vpop.f32.mrf.mxu0
  %v1146 = vadd.f32 %v1009, %v1145
  %v1147 = vpop.f32.mrf.mxu0
  %v1148 = vadd.f32 %v1013, %v1147
  %v1149 = vpop.f32.mrf.mxu0
  %v1150 = vadd.f32 %v1009, %v1149
  %v1151 = vpop.f32.mrf.mxu0
  %v1152 = vadd.f32 %v1013, %v1151
  %1153 = vmatprep.mubr.bf16.mxu0 0
  %1154 = vmatmul.mubr.bf16.gmra.mxu0 %v1049
  %v1155 = vpop.f32.mrf.mxu0
  %v1156 = vadd.f32 %v1009, %v1155
  %v1157 = vpop.f32.mrf.mxu0
  %v1158 = vadd.f32 %v1013, %v1157
  %v1159 = vpop.f32.mrf.mxu0
  %v1160 = vadd.f32 %v1009, %v1159
  %v1161 = vpop.f32.mrf.mxu0
  %v1162 = vadd.f32 %v1013, %v1161
  %1163 = vdwg.mxu0
  %vm1164 = vcmp.ge.f32.partialorder %v1086, 0.0
  %vm1165 = vcmp.ge.f32.partialorder %v1088, 0.0
  %vm1166 = vcmp.ge.f32.partialorder %v1090, 0.0
  %vm1167 = vcmp.ge.f32.partialorder %v1092, 0.0
  %vm1168 = vcmp.ge.f32.partialorder %v1096, 0.0
  %vm1169 = vcmp.ge.f32.partialorder %v1098, 0.0
  %vm1170 = vcmp.ge.f32.partialorder %v1100, 0.0
  %vm1171 = vcmp.ge.f32.partialorder %v1102, 0.0
  %vm1172 = vcmp.ge.f32.partialorder %v1106, 0.0
  %vm1173 = vcmp.ge.f32.partialorder %v1108, 0.0
  %vm1174 = vcmp.ge.f32.partialorder %v1110, 0.0
  %vm1175 = vcmp.ge.f32.partialorder %v1112, 0.0
  %vm1176 = vcmp.ge.f32.partialorder %v1116, 0.0
  %vm1177 = vcmp.ge.f32.partialorder %v1118, 0.0
  %vm1178 = vcmp.ge.f32.partialorder %v1120, 0.0
  %vm1179 = vcmp.ge.f32.partialorder %v1122, 0.0
  %vm1180 = vcmp.ge.f32.partialorder %v1126, 0.0
  %vm1181 = vcmp.ge.f32.partialorder %v1128, 0.0
  %vm1182 = vcmp.ge.f32.partialorder %v1130, 0.0
  %vm1183 = vcmp.ge.f32.partialorder %v1132, 0.0
  %vm1184 = vcmp.ge.f32.partialorder %v1136, 0.0
  %vm1185 = vcmp.ge.f32.partialorder %v1138, 0.0
  %vm1186 = vcmp.ge.f32.partialorder %v1140, 0.0
  %vm1187 = vcmp.ge.f32.partialorder %v1142, 0.0
  %vm1188 = vcmp.ge.f32.partialorder %v1146, 0.0
  %vm1189 = vcmp.ge.f32.partialorder %v1148, 0.0
  %vm1190 = vcmp.ge.f32.partialorder %v1150, 0.0
  %vm1191 = vcmp.ge.f32.partialorder %v1152, 0.0
  %vm1192 = vcmp.ge.f32.partialorder %v1156, 0.0
  %vm1193 = vcmp.ge.f32.partialorder %v1158, 0.0
  %vm1194 = vcmp.ge.f32.partialorder %v1160, 0.0
  %vm1195 = vcmp.ge.f32.partialorder %v1162, 0.0
  %v1196 = vmul.f32 %v1086, 0.01
  %v1197 = vmul.f32 %v1088, 0.01
  %v1198 = vmul.f32 %v1090, 0.01
  %v1199 = vmul.f32 %v1092, 0.01
  %v1200 = vmul.f32 %v1096, 0.01
  %v1201 = vmul.f32 %v1098, 0.01
  %v1202 = vmul.f32 %v1100, 0.01
  %v1203 = vmul.f32 %v1102, 0.01
  %v1204 = vmul.f32 %v1106, 0.01
  %v1205 = vmul.f32 %v1108, 0.01
  %v1206 = vmul.f32 %v1110, 0.01
  %v1207 = vmul.f32 %v1112, 0.01
  %v1208 = vmul.f32 %v1116, 0.01
  %v1209 = vmul.f32 %v1118, 0.01
  %v1210 = vmul.f32 %v1120, 0.01
  %v1211 = vmul.f32 %v1122, 0.01
  %v1212 = vmul.f32 %v1126, 0.01
  %v1213 = vmul.f32 %v1128, 0.01
  %v1214 = vmul.f32 %v1130, 0.01
  %v1215 = vmul.f32 %v1132, 0.01
  %v1216 = vmul.f32 %v1136, 0.01
  %v1217 = vmul.f32 %v1138, 0.01
  %v1218 = vmul.f32 %v1140, 0.01
  %v1219 = vmul.f32 %v1142, 0.01
  %v1220 = vmul.f32 %v1146, 0.01
  %v1221 = vmul.f32 %v1148, 0.01
  %v1222 = vmul.f32 %v1150, 0.01
  %v1223 = vmul.f32 %v1152, 0.01
  %v1224 = vmul.f32 %v1156, 0.01
  %v1225 = vmul.f32 %v1158, 0.01
  %v1226 = vmul.f32 %v1160, 0.01
  %v1227 = vmul.f32 %v1162, 0.01
  %v1228 = vsel %vm1164, %v1086, %v1196
  %v1229 = vsel %vm1165, %v1088, %v1197
  %v1230 = vsel %vm1166, %v1090, %v1198
  %v1231 = vsel %vm1167, %v1092, %v1199
  %v1232 = vsel %vm1168, %v1096, %v1200
  %v1233 = vsel %vm1169, %v1098, %v1201
  %v1234 = vsel %vm1170, %v1100, %v1202
  %v1235 = vsel %vm1171, %v1102, %v1203
  %v1236 = vsel %vm1172, %v1106, %v1204
  %v1237 = vsel %vm1173, %v1108, %v1205
  %v1238 = vsel %vm1174, %v1110, %v1206
  %v1239 = vsel %vm1175, %v1112, %v1207
  %v1240 = vsel %vm1176, %v1116, %v1208
  %v1241 = vsel %vm1177, %v1118, %v1209
  %v1242 = vsel %vm1178, %v1120, %v1210
  %v1243 = vsel %vm1179, %v1122, %v1211
  %v1244 = vsel %vm1180, %v1126, %v1212
  %v1245 = vsel %vm1181, %v1128, %v1213
  %v1246 = vsel %vm1182, %v1130, %v1214
  %v1247 = vsel %vm1183, %v1132, %v1215
  %v1248 = vsel %vm1184, %v1136, %v1216
  %v1249 = vsel %vm1185, %v1138, %v1217
  %v1250 = vsel %vm1186, %v1140, %v1218
  %v1251 = vsel %vm1187, %v1142, %v1219
  %v1252 = vsel %vm1188, %v1146, %v1220
  %v1253 = vsel %vm1189, %v1148, %v1221
  %v1254 = vsel %vm1190, %v1150, %v1222
  %v1255 = vsel %vm1191, %v1152, %v1223
  %v1256 = vsel %vm1192, %v1156, %v1224
  %v1257 = vsel %vm1193, %v1158, %v1225
  %v1258 = vsel %vm1194, %v1160, %v1226
  %v1259 = vsel %vm1195, %v1162, %v1227
  %v1260 = vpack.c.bf16 %v1230, %v1228
  %v1261 = vpack.c.bf16 %v1231, %v1229
  %v1262 = vpack.c.bf16 %v1234, %v1232
  %v1263 = vpack.c.bf16 %v1235, %v1233
  %v1264 = vpack.c.bf16 %v1238, %v1236
  %v1265 = vpack.c.bf16 %v1239, %v1237
  %v1266 = vpack.c.bf16 %v1242, %v1240
  %v1267 = vpack.c.bf16 %v1243, %v1241
  %v1268 = vpack.c.bf16 %v1246, %v1244
  %v1269 = vpack.c.bf16 %v1247, %v1245
  %v1270 = vpack.c.bf16 %v1250, %v1248
  %v1271 = vpack.c.bf16 %v1251, %v1249
  %v1272 = vpack.c.bf16 %v1254, %v1252
  %v1273 = vpack.c.bf16 %v1255, %v1253
  %v1274 = vpack.c.bf16 %v1258, %v1256
  %v1275 = vpack.c.bf16 %v1259, %v1257
  %v1276 = vld [vmem:[%s10] sm:$0xf]
  %v1277 = vld [vmem:[%s10 + $0x4] sm:$0xf]
  %v1278 = vld [vmem:[%s10 + $0x8] sm:$0xf]
  %v1279 = vld [vmem:[%s10 + $0xc] sm:$0xf]
  %v1280 = vld [vmem:[%s10 + $0x10] sm:$0xf]
  %v1281 = vld [vmem:[%s10 + $0x14] sm:$0xf]
  %v1282 = vld [vmem:[%s10 + $0x18] sm:$0xf]
  %v1283 = vld [vmem:[%s10 + $0x1c] sm:$0xf]
  %v1284 = vld [vmem:[%s10 + $0x20] sm:$0xf]
  %v1285 = vld [vmem:[%s10 + $0x24] sm:$0xf]
  %v1286 = vld [vmem:[%s10 + $0x28] sm:$0xf]
  %v1287 = vld [vmem:[%s10 + $0x2c] sm:$0xf]
  %v1288 = vld [vmem:[%s10 + $0x30] sm:$0xf]
  %v1289 = vld [vmem:[%s10 + $0x34] sm:$0xf]
  %v1290 = vld [vmem:[%s10 + $0x38] sm:$0xf]
  %v1291 = vld [vmem:[%s10 + $0x3c] sm:$0xf]
  %v1292 = vld [vmem:[%s10 + $0x40] sm:$0xf]
  %v1293 = vld [vmem:[%s10 + $0x44] sm:$0xf]
  %v1294 = vld [vmem:[%s10 + $0x48] sm:$0xf]
  %v1295 = vld [vmem:[%s10 + $0x4c] sm:$0xf]
  %v1296 = vld [vmem:[%s10 + $0x50] sm:$0xf]
  %v1297 = vld [vmem:[%s10 + $0x54] sm:$0xf]
  %v1298 = vld [vmem:[%s10 + $0x58] sm:$0xf]
  %v1299 = vld [vmem:[%s10 + $0x5c] sm:$0xf]
  %v1300 = vld [vmem:[%s10 + $0x60] sm:$0xf]
  %v1301 = vld [vmem:[%s10 + $0x64] sm:$0xf]
  %v1302 = vld [vmem:[%s10 + $0x68] sm:$0xf]
  %v1303 = vld [vmem:[%s10 + $0x6c] sm:$0xf]
  %v1304 = vld [vmem:[%s10 + $0x70] sm:$0xf]
  %v1305 = vld [vmem:[%s10 + $0x74] sm:$0xf]
  %v1306 = vld [vmem:[%s10 + $0x78] sm:$0xf]
  %v1307 = vld [vmem:[%s10 + $0x7c] sm:$0xf]
  %v1308 = vld [vmem:[%s11] sm:$0x1]
  %v1310 = vlaneseq
  %v1311 = vshrl.u32 %v1310, 7
  %v1312 = vsub.s32 0, %v1311
  %v1313 = vrot.slane %v1308, %v1312
  %v1347 = vunpack.c.l.b16 %v1276
  %v1348 = vunpack.c.l.b16 %v1277
  %v1349 = vunpack.c.l.b16 %v1278
  %v1350 = vunpack.c.l.b16 %v1279
  %v1351 = vunpack.c.l.b16 %v1280
  %v1352 = vunpack.c.l.b16 %v1281
  %v1353 = vunpack.c.l.b16 %v1282
  %v1354 = vunpack.c.l.b16 %v1283
  %v1355 = vunpack.c.l.b16 %v1284
  %v1356 = vunpack.c.l.b16 %v1285
  %v1357 = vunpack.c.l.b16 %v1286
  %v1358 = vunpack.c.l.b16 %v1287
  %v1359 = vunpack.c.l.b16 %v1288
  %v1360 = vunpack.c.l.b16 %v1289
  %v1361 = vunpack.c.l.b16 %v1290
  %v1362 = vunpack.c.l.b16 %v1291
  %v1363 = vunpack.c.l.b16 %v1292
  %v1364 = vunpack.c.l.b16 %v1293
  %v1365 = vunpack.c.l.b16 %v1294
  %v1366 = vunpack.c.l.b16 %v1295
  %v1367 = vunpack.c.l.b16 %v1296
  %v1368 = vunpack.c.l.b16 %v1297
  %v1369 = vunpack.c.l.b16 %v1298
  %v1370 = vunpack.c.l.b16 %v1299
  %v1371 = vunpack.c.l.b16 %v1300
  %v1372 = vunpack.c.l.b16 %v1301
  %v1373 = vunpack.c.l.b16 %v1302
  %v1374 = vunpack.c.l.b16 %v1303
  %v1375 = vunpack.c.l.b16 %v1304
  %v1376 = vunpack.c.l.b16 %v1305
  %v1377 = vunpack.c.l.b16 %v1306
  %v1378 = vunpack.c.l.b16 %v1307
  %v1379 = vpack.c.b16 %v1348, %v1347
  %v1380 = vpack.c.b16 %v1350, %v1349
  %v1381 = vpack.c.b16 %v1352, %v1351
  %v1382 = vpack.c.b16 %v1354, %v1353
  %v1383 = vpack.c.b16 %v1356, %v1355
  %v1384 = vpack.c.b16 %v1358, %v1357
  %v1385 = vpack.c.b16 %v1360, %v1359
  %v1386 = vpack.c.b16 %v1362, %v1361
  %v1387 = vpack.c.b16 %v1364, %v1363
  %v1388 = vpack.c.b16 %v1366, %v1365
  %v1389 = vpack.c.b16 %v1368, %v1367
  %v1390 = vpack.c.b16 %v1370, %v1369
  %v1391 = vpack.c.b16 %v1372, %v1371
  %v1392 = vpack.c.b16 %v1374, %v1373
  %v1393 = vpack.c.b16 %v1376, %v1375
  %v1394 = vpack.c.b16 %v1378, %v1377
  %1411 = vmatprep.subr.bf16.mxu0 0
  %1412 = vmatpush1.bf16.msra.mxu0 %v1386
  %1413 = vmatprep.subr.bf16.mxu0 0
  %1414 = vmatpush1.bf16.msra.mxu0 %v1385
  %1415 = vmatprep.subr.bf16.mxu0 0
  %1416 = vmatpush1.bf16.msra.mxu0 %v1384
  %1417 = vmatprep.subr.bf16.mxu0 0
  %1418 = vmatpush1.bf16.msra.mxu0 %v1383
  %1419 = vmatprep.subr.bf16.mxu0 0
  %1420 = vmatpush1.bf16.msra.mxu0 %v1382
  %1421 = vmatprep.subr.bf16.mxu0 0
  %1422 = vmatpush1.bf16.msra.mxu0 %v1381
  %1423 = vmatprep.subr.bf16.mxu0 0
  %1424 = vmatpush1.bf16.msra.mxu0 %v1380
  %1425 = vmatprep.subr.bf16.mxu0 0
  %1426 = vmatpush1.bf16.msra.mxu0 %v1379
  %1427 = vmatprep.subr.bf16.mxu0 0
  %1428 = vmatpush2.bf16.msra.mxu0 %v1394
  %1429 = vmatprep.subr.bf16.mxu0 0
  %1430 = vmatpush2.bf16.msra.mxu0 %v1393
  %1431 = vmatprep.subr.bf16.mxu0 0
  %1432 = vmatpush2.bf16.msra.mxu0 %v1392
  %1433 = vmatprep.subr.bf16.mxu0 0
  %1434 = vmatpush2.bf16.msra.mxu0 %v1391
  %1435 = vmatprep.subr.bf16.mxu0 0
  %1436 = vmatpush2.bf16.msra.mxu0 %v1390
  %1437 = vmatprep.subr.bf16.mxu0 0
  %1438 = vmatpush2.bf16.msra.mxu0 %v1389
  %1439 = vmatprep.subr.bf16.mxu0 0
  %1440 = vmatpush2.bf16.msra.mxu0 %v1388
  %1441 = vmatprep.subr.bf16.mxu0 0
  %1442 = vmatpush2.bf16.msra.mxu0 %v1387
  %1443 = vmatprep.mubr.bf16.mxu0 %v1261
  %1444 = vmatmul.mubr.bf16.gmra.mxu0 %v1260
  %v1445 = vpop.f32.mrf.mxu0
  %v1446 = vadd.f32 %v1313, %v1445
  %v1447 = vpop.f32.mrf.mxu0
  %v1448 = vpop.f32.mrf.mxu0
  %v1449 = vadd.f32 %v1313, %v1448
  %v1450 = vpop.f32.mrf.mxu0
  %1451 = vmatprep.mubr.bf16.mxu0 %v1263
  %1452 = vmatmul.mubr.bf16.gmra.mxu0 %v1262
  %v1453 = vpop.f32.mrf.mxu0
  %v1454 = vadd.f32 %v1313, %v1453
  %v1455 = vpop.f32.mrf.mxu0
  %v1456 = vpop.f32.mrf.mxu0
  %v1457 = vadd.f32 %v1313, %v1456
  %v1458 = vpop.f32.mrf.mxu0
  %1459 = vmatprep.mubr.bf16.mxu0 %v1265
  %1460 = vmatmul.mubr.bf16.gmra.mxu0 %v1264
  %v1461 = vpop.f32.mrf.mxu0
  %v1462 = vadd.f32 %v1313, %v1461
  %v1463 = vpop.f32.mrf.mxu0
  %v1464 = vpop.f32.mrf.mxu0
  %v1465 = vadd.f32 %v1313, %v1464
  %v1466 = vpop.f32.mrf.mxu0
  %1467 = vmatprep.mubr.bf16.mxu0 %v1267
  %1468 = vmatmul.mubr.bf16.gmra.mxu0 %v1266
  %v1469 = vpop.f32.mrf.mxu0
  %v1470 = vadd.f32 %v1313, %v1469
  %v1471 = vpop.f32.mrf.mxu0
  %v1472 = vpop.f32.mrf.mxu0
  %v1473 = vadd.f32 %v1313, %v1472
  %v1474 = vpop.f32.mrf.mxu0
  %1475 = vmatprep.mubr.bf16.mxu0 %v1269
  %1476 = vmatmul.mubr.bf16.gmra.mxu0 %v1268
  %v1477 = vpop.f32.mrf.mxu0
  %v1478 = vadd.f32 %v1313, %v1477
  %v1479 = vpop.f32.mrf.mxu0
  %v1480 = vpop.f32.mrf.mxu0
  %v1481 = vadd.f32 %v1313, %v1480
  %v1482 = vpop.f32.mrf.mxu0
  %1483 = vmatprep.mubr.bf16.mxu0 %v1271
  %1484 = vmatmul.mubr.bf16.gmra.mxu0 %v1270
  %v1485 = vpop.f32.mrf.mxu0
  %v1486 = vadd.f32 %v1313, %v1485
  %v1487 = vpop.f32.mrf.mxu0
  %v1488 = vpop.f32.mrf.mxu0
  %v1489 = vadd.f32 %v1313, %v1488
  %v1490 = vpop.f32.mrf.mxu0
  %1491 = vmatprep.mubr.bf16.mxu0 %v1273
  %1492 = vmatmul.mubr.bf16.gmra.mxu0 %v1272
  %v1493 = vpop.f32.mrf.mxu0
  %v1494 = vadd.f32 %v1313, %v1493
  %v1495 = vpop.f32.mrf.mxu0
  %v1496 = vpop.f32.mrf.mxu0
  %v1497 = vadd.f32 %v1313, %v1496
  %v1498 = vpop.f32.mrf.mxu0
  %1499 = vmatprep.mubr.bf16.mxu0 %v1275
  %1500 = vmatmul.mubr.bf16.gmra.mxu0 %v1274
  %v1501 = vpop.f32.mrf.mxu0
  %v1502 = vadd.f32 %v1313, %v1501
  %v1503 = vpop.f32.mrf.mxu0
  %v1504 = vpop.f32.mrf.mxu0
  %v1505 = vadd.f32 %v1313, %v1504
  %v1506 = vpop.f32.mrf.mxu0
  %1507 = vdwg.mxu0
  %v1508 = vsub.f32 0.0, %v1446
  %v1509 = vsub.f32 0.0, %v1449
  %v1510 = vsub.f32 0.0, %v1454
  %v1511 = vsub.f32 0.0, %v1457
  %v1512 = vsub.f32 0.0, %v1462
  %v1513 = vsub.f32 0.0, %v1465
  %v1514 = vsub.f32 0.0, %v1470
  %v1515 = vsub.f32 0.0, %v1473
  %v1516 = vsub.f32 0.0, %v1478
  %v1517 = vsub.f32 0.0, %v1481
  %v1518 = vsub.f32 0.0, %v1486
  %v1519 = vsub.f32 0.0, %v1489
  %v1520 = vsub.f32 0.0, %v1494
  %v1521 = vsub.f32 0.0, %v1497
  %v1522 = vsub.f32 0.0, %v1502
  %v1523 = vsub.f32 0.0, %v1505
  %v1524 = vmul.f32 %v1508, 1.442695
  %v1525 = vpow.pop %v1524
  %v1526 = vmul.f32 %v1509, 1.442695
  %v1527 = vpow.pop %v1526
  %v1528 = vmul.f32 %v1510, 1.442695
  %v1529 = vpow.pop %v1528
  %v1530 = vmul.f32 %v1511, 1.442695
  %v1531 = vpow.pop %v1530
  %v1532 = vmul.f32 %v1512, 1.442695
  %v1533 = vpow.pop %v1532
  %v1534 = vmul.f32 %v1513, 1.442695
  %v1535 = vpow.pop %v1534
  %v1536 = vmul.f32 %v1514, 1.442695
  %v1537 = vpow.pop %v1536
  %v1538 = vmul.f32 %v1515, 1.442695
  %v1539 = vpow.pop %v1538
  %v1540 = vmul.f32 %v1516, 1.442695
  %v1541 = vpow.pop %v1540
  %v1542 = vmul.f32 %v1517, 1.442695
  %v1543 = vpow.pop %v1542
  %v1544 = vmul.f32 %v1518, 1.442695
  %v1545 = vpow.pop %v1544
  %v1546 = vmul.f32 %v1519, 1.442695
  %v1547 = vpow.pop %v1546
  %v1548 = vmul.f32 %v1520, 1.442695
  %v1549 = vpow.pop %v1548
  %v1550 = vmul.f32 %v1521, 1.442695
  %v1551 = vpow.pop %v1550
  %v1552 = vmul.f32 %v1522, 1.442695
  %v1553 = vpow.pop %v1552
  %v1554 = vmul.f32 %v1523, 1.442695
  %v1555 = vpow.pop %v1554
  %v1556 = vadd.f32 %v1525, 1.0
  %v1557 = vadd.f32 %v1527, 1.0
  %v1558 = vadd.f32 %v1529, 1.0
  %v1559 = vadd.f32 %v1531, 1.0
  %v1560 = vadd.f32 %v1533, 1.0
  %v1561 = vadd.f32 %v1535, 1.0
  %v1562 = vadd.f32 %v1537, 1.0
  %v1563 = vadd.f32 %v1539, 1.0
  %v1564 = vadd.f32 %v1541, 1.0
  %v1565 = vadd.f32 %v1543, 1.0
  %v1566 = vadd.f32 %v1545, 1.0
  %v1567 = vadd.f32 %v1547, 1.0
  %v1568 = vadd.f32 %v1549, 1.0
  %v1569 = vadd.f32 %v1551, 1.0
  %v1570 = vadd.f32 %v1553, 1.0
  %v1571 = vadd.f32 %v1555, 1.0
  %v1572 = vrcp.pop %v1556
  %v1573 = vrcp.pop %v1557
  %v1574 = vrcp.pop %v1558
  %v1575 = vrcp.pop %v1559
  %v1576 = vrcp.pop %v1560
  %v1577 = vrcp.pop %v1561
  %v1578 = vrcp.pop %v1562
  %v1579 = vrcp.pop %v1563
  %v1580 = vrcp.pop %v1564
  %v1581 = vrcp.pop %v1565
  %v1582 = vrcp.pop %v1566
  %v1583 = vrcp.pop %v1567
  %v1584 = vrcp.pop %v1568
  %v1585 = vrcp.pop %v1569
  %v1586 = vrcp.pop %v1570
  %v1587 = vrcp.pop %v1571
  %1588 = vst [vmem:[%s12] sm:$0xff] %v1572
  %1589 = vst [vmem:[%s12 + $0x8] sm:$0xff] %v1573
  %1590 = vst [vmem:[%s12 + $0x10] sm:$0xff] %v1574
  %1591 = vst [vmem:[%s12 + $0x18] sm:$0xff] %v1575
  %1592 = vst [vmem:[%s12 + $0x20] sm:$0xff] %v1576
  %1593 = vst [vmem:[%s12 + $0x28] sm:$0xff] %v1577
  %1594 = vst [vmem:[%s12 + $0x30] sm:$0xff] %v1578
  %1595 = vst [vmem:[%s12 + $0x38] sm:$0xff] %v1579
  %1596 = vst [vmem:[%s12 + $0x40] sm:$0xff] %v1580
  %1597 = vst [vmem:[%s12 + $0x48] sm:$0xff] %v1581
  %1598 = vst [vmem:[%s12 + $0x50] sm:$0xff] %v1582
  %1599 = vst [vmem:[%s12 + $0x58] sm:$0xff] %v1583
  %1600 = vst [vmem:[%s12 + $0x60] sm:$0xff] %v1584
  %1601 = vst [vmem:[%s12 + $0x68] sm:$0xff] %v1585
  %1602 = vst [vmem:[%s12 + $0x70] sm:$0xff] %v1586
  %1603 = vst [vmem:[%s12 + $0x78] sm:$0xff] %v1587
  %1604 = vst.msk [vmem:[%s13] sm:$0xff] %vm712, %v772
  %1605 = vst.msk [vmem:[%s13 + $0x8] sm:$0xff] %vm712, %v775
  %1606 = vst.msk [vmem:[%s13 + $0x10] sm:$0xff] %vm712, %v780
  %1607 = vst.msk [vmem:[%s13 + $0x18] sm:$0xff] %vm712, %v783
  %1608 = vst.msk [vmem:[%s13 + $0x20] sm:$0xff] %vm712, %v788
  %1609 = vst.msk [vmem:[%s13 + $0x28] sm:$0xff] %vm712, %v791
  %1610 = vst.msk [vmem:[%s13 + $0x30] sm:$0xff] %vm712, %v796
  %1611 = vst.msk [vmem:[%s13 + $0x38] sm:$0xff] %vm712, %v799
  %1612 = vst.msk [vmem:[%s13 + $0x40] sm:$0xff] %vm712, %v804
  %1613 = vst.msk [vmem:[%s13 + $0x48] sm:$0xff] %vm712, %v807
  %1614 = vst.msk [vmem:[%s13 + $0x50] sm:$0xff] %vm712, %v812
  %1615 = vst.msk [vmem:[%s13 + $0x58] sm:$0xff] %vm712, %v815
  %1616 = vst.msk [vmem:[%s13 + $0x60] sm:$0xff] %vm712, %v820
  %1617 = vst.msk [vmem:[%s13 + $0x68] sm:$0xff] %vm712, %v823
  %1618 = vst.msk [vmem:[%s13 + $0x70] sm:$0xff] %vm712, %v828
  %1619 = vst.msk [vmem:[%s13 + $0x78] sm:$0xff] %vm712, %v831
  // Predicated region
  $region50: #{vae_forward.1} parent=0 // pred_check
    _
  $region51: #{vae_forward.1} parent=0 // pred_check_branch
    %1621 = sbr.rel (0) target = $region53
  $region52: #{vae_forward.1} parent=0 // pred_region
    _
  $region53: #{vae_forward.1} parent=0 // pred_fallthru
    _
  // Predicated region
  $region54: #{vae_forward.1} parent=0 // pred_check
    _
  $region55: #{vae_forward.1} parent=0 // pred_check_branch
    %1623 = sbr.rel (0) target = $region57
  $region56: #{vae_forward.1} parent=0 // pred_region
    _
  $region57: #{vae_forward.1} parent=0 // pred_fallthru
    _
  // Predicated region
  $region58: #{vae_forward.1} parent=0 // pred_check
    _
  $region59: #{vae_forward.1} parent=0 // pred_check_branch
    %1625 = sbr.rel (0) target = $region61
  $region60: #{vae_forward.1} parent=0 // pred_region
    _
  $region61: #{vae_forward.1} parent=0 // pred_fallthru
    _
  // Predicated region
  $region62: #{vae_forward.1} parent=0 // pred_check
    _
  $region63: #{vae_forward.1} parent=0 // pred_check_branch
    %1627 = sbr.rel (0) target = $region65
  $region64: #{vae_forward.1} parent=0 // pred_region
    _
  $region65: #{vae_forward.1} parent=0 // pred_fallthru
    _

</llo_original>
